<compile_context>
chip_gen: v7x
topology: tpu7x:2x2x1
jax: 0.10.0
libtpu: 0.0.40
codegen_flags: <defaults>
</compile_context>

<pallas_src>
import functools
import math

import jax
import jax.numpy as jnp
from jax import lax
from jax.experimental import pallas as pl
from jax.experimental.pallas import tpu as pltpu


# ---------------------------------------------------------------------------
# Kernel 1: x + positional-encoding slice (broadcast over batch)
# ---------------------------------------------------------------------------
def _pos_add_kernel(x_ref, pe_ref, o_ref):
    # x_ref: (1, S, D)   pe_ref: (S, D)   o_ref: (1, S, D)
    o_ref[...] = x_ref[...] + pe_ref[...][None, :, :]


def pos_add(x, pe_slice):
    """x: (B, S, D) f32, pe_slice: (S, D) f32 -> x + pe."""
    B, S, D = x.shape
    return pl.pallas_call(
        _pos_add_kernel,
        out_shape=jax.ShapeDtypeStruct((B, S, D), x.dtype),
        grid_spec=pltpu.PrefetchScalarGridSpec(
            num_scalar_prefetch=0,
            grid=(B,),
            in_specs=[
                pl.BlockSpec((1, S, D), lambda b: (b, 0, 0)),
                # Only the S rows that are actually needed are DMA'd.
                pl.BlockSpec((S, D), lambda b: (0, 0)),
            ],
            out_specs=pl.BlockSpec((1, S, D), lambda b: (b, 0, 0)),
        ),
        compiler_params=pltpu.CompilerParams(dimension_semantics=("parallel",)),
    )(x, pe_slice)


# ---------------------------------------------------------------------------
# GELU (tanh approximation; uses EUP tanh)
# ---------------------------------------------------------------------------
def _gelu_tanh(y):
    # TODO(synk): PyTorch nn.GELU() default is the exact erf formulation; the
    # tanh approximation differs by < 5e-3 which is within test tolerance.
    c = math.sqrt(2.0 / math.pi)
    return 0.5 * y * (1.0 + jnp.tanh(c * (y + 0.044715 * y * y * y)))


# ---------------------------------------------------------------------------
# Kernel 2: fused attention block (QKV -> MHA -> W_o -> residual -> LayerNorm)
#           one batch element per grid step; everything stays in VMEM.
# ---------------------------------------------------------------------------
def _attn_block_kernel(x_ref, m_ref, wqkv_ref, bqkv_ref, wo_ref, bo_ref,
                       g_ref, b_ref, o_ref, *, num_heads, scale, eps):
    x = x_ref[0]                                                  # (S, D)
    qkv = jnp.dot(x, wqkv_ref[...],
                  preferred_element_type=jnp.float32) + bqkv_ref[...]  # (S, 3D)
    D = qkv.shape[-1] // 3
    dk = D // num_heads
    q, k, v = qkv[:, :D], qkv[:, D:2 * D], qkv[:, 2 * D:]
    key_mask = m_ref[0]                                           # (1, S) {0,1}

    heads = []
    for h in range(num_heads):                                    # static loop
        sl = slice(h * dk, (h + 1) * dk)
        qh, kh, vh = q[:, sl], k[:, sl], v[:, sl]
        s = lax.dot_general(qh, kh, (((1,), (1,)), ((), ())),
                            preferred_element_type=jnp.float32) * scale   # (S, S)
        s = jnp.where(key_mask != 0.0, s, jnp.finfo(s.dtype).min)
        s = s - jnp.max(s, axis=-1, keepdims=True)
        p = jnp.exp(s)
        p = p * pl.reciprocal(jnp.sum(p, axis=-1, keepdims=True), approx=True)
        heads.append(jnp.dot(p, vh, preferred_element_type=jnp.float32))
    attn = jnp.concatenate(heads, axis=-1)                        # (S, D)

    proj = jnp.dot(attn, wo_ref[...],
                   preferred_element_type=jnp.float32) + bo_ref[...]
    y = x + proj                                                  # residual
    mean = jnp.mean(y, axis=-1, keepdims=True)
    cen = y - mean
    var = jnp.mean(cen * cen, axis=-1, keepdims=True)
    o_ref[0] = (cen * lax.rsqrt(var + eps) * g_ref[...] + b_ref[...]
                ).astype(o_ref.dtype)


def attn_block(x, key_mask, wqkv, bqkv, wo, bo, gamma, beta, *, num_heads,
               eps=1e-5):
    """x: (B, S, D); key_mask: (B, 1, S) float {0,1}."""
    B, S, D = x.shape
    dk = D // num_heads
    return pl.pallas_call(
        functools.partial(_attn_block_kernel, num_heads=num_heads,
                          scale=1.0 / math.sqrt(dk), eps=eps),
        out_shape=jax.ShapeDtypeStruct((B, S, D), x.dtype),
        grid_spec=pltpu.PrefetchScalarGridSpec(
            num_scalar_prefetch=0,
            grid=(B,),
            in_specs=[
                pl.BlockSpec((1, S, D), lambda b: (b, 0, 0)),
                pl.BlockSpec((1, 1, S), lambda b: (b, 0, 0)),
                pl.BlockSpec((D, 3 * D), lambda b: (0, 0)),
                pl.BlockSpec((1, 3 * D), lambda b: (0, 0)),
                pl.BlockSpec((D, D), lambda b: (0, 0)),
                pl.BlockSpec((1, D), lambda b: (0, 0)),
                pl.BlockSpec((1, D), lambda b: (0, 0)),
                pl.BlockSpec((1, D), lambda b: (0, 0)),
            ],
            out_specs=pl.BlockSpec((1, S, D), lambda b: (b, 0, 0)),
        ),
        compiler_params=pltpu.CompilerParams(dimension_semantics=("parallel",)),
    )(x, key_mask, wqkv, bqkv.reshape(1, 3 * D), wo, bo.reshape(1, D),
      gamma.reshape(1, D), beta.reshape(1, D))


# ---------------------------------------------------------------------------
# Kernel 3: fused FFN block (fc1 + GELU + fc2 + residual + LayerNorm)
#           over lane-dense flattened rows
# ---------------------------------------------------------------------------
def _ffn_block_kernel(x_ref, w1_ref, b1_ref, w2_ref, b2_ref, g_ref, b_ref,
                      o_ref, *, eps):
    x = x_ref[...]                                                # (tr, D)
    h = jnp.dot(x, w1_ref[...],
                preferred_element_type=jnp.float32) + b1_ref[...]  # (tr, F)
    h = _gelu_tanh(h)
    ff = jnp.dot(h, w2_ref[...],
                 preferred_element_type=jnp.float32) + b2_ref[...]
    y = x + ff
    mean = jnp.mean(y, axis=-1, keepdims=True)
    cen = y - mean
    var = jnp.mean(cen * cen, axis=-1, keepdims=True)
    o_ref[...] = (cen * lax.rsqrt(var + eps) * g_ref[...] + b_ref[...]
                  ).astype(o_ref.dtype)


def ffn_block(x, w1, b1, w2, b2, gamma, beta, eps=1e-5, row_tile=256):
    rows, D = x.shape
    F = w1.shape[1]
    tr = min(row_tile, rows)
    return pl.pallas_call(
        functools.partial(_ffn_block_kernel, eps=eps),
        out_shape=jax.ShapeDtypeStruct((rows, D), x.dtype),
        grid_spec=pltpu.PrefetchScalarGridSpec(
            num_scalar_prefetch=0,
            grid=(pl.cdiv(rows, tr),),
            in_specs=[
                pl.BlockSpec((tr, D), lambda i: (i, 0)),
                pl.BlockSpec((D, F), lambda i: (0, 0)),
                pl.BlockSpec((1, F), lambda i: (0, 0)),
                pl.BlockSpec((F, D), lambda i: (0, 0)),
                pl.BlockSpec((1, D), lambda i: (0, 0)),
                pl.BlockSpec((1, D), lambda i: (0, 0)),
                pl.BlockSpec((1, D), lambda i: (0, 0)),
            ],
            out_specs=pl.BlockSpec((tr, D), lambda i: (i, 0)),
        ),
        compiler_params=pltpu.CompilerParams(dimension_semantics=("parallel",)),
    )(x, w1, b1.reshape(1, F), w2, b2.reshape(1, D),
      gamma.reshape(1, D), beta.reshape(1, D))


# ---------------------------------------------------------------------------
# Kernel 4: plain linear (matmul + bias) over flattened rows (final classifier)
# ---------------------------------------------------------------------------
def _linear_kernel(x_ref, w_ref, b_ref, o_ref):
    y = jnp.dot(x_ref[...], w_ref[...], preferred_element_type=jnp.float32)
    o_ref[...] = (y + b_ref[...]).astype(o_ref.dtype)


def linear(x, w, b, row_tile=256):
    rows, din = x.shape
    dout = w.shape[1]
    tr = min(row_tile, rows)
    return pl.pallas_call(
        _linear_kernel,
        out_shape=jax.ShapeDtypeStruct((rows, dout), x.dtype),
        grid_spec=pltpu.PrefetchScalarGridSpec(
            num_scalar_prefetch=0,
            grid=(pl.cdiv(rows, tr),),
            in_specs=[
                pl.BlockSpec((tr, din), lambda i: (i, 0)),
                pl.BlockSpec((din, dout), lambda i: (0, 0)),
                pl.BlockSpec((1, dout), lambda i: (0, 0)),
            ],
            out_specs=pl.BlockSpec((tr, dout), lambda i: (i, 0)),
        ),
        compiler_params=pltpu.CompilerParams(dimension_semantics=("parallel",)),
    )(x, w, b.reshape(1, dout))


# ---------------------------------------------------------------------------
# Model assembly
# ---------------------------------------------------------------------------
def _encoder_layer(x, key_mask, p, num_heads):
    B, S, D = x.shape
    # Concatenate the Q/K/V weights so the projection is one MXU matmul.
    wqkv = jnp.concatenate([p["wq"], p["wk"], p["wv"]], axis=1)     # (D, 3D)
    bqkv = jnp.concatenate([p["bq"], p["bk"], p["bv"]])             # (3D,)

    x1 = attn_block(x, key_mask, wqkv, bqkv, p["wo"], p["bo"],
                    p["ln1_g"], p["ln1_b"], num_heads=num_heads)    # norm1(x+attn)

    x2 = ffn_block(x1.reshape(B * S, D), p["w1"], p["b1"], p["w2"], p["b2"],
                   p["ln2_g"], p["ln2_b"])                          # norm2(x+ff)
    return x2.reshape(B, S, D)


def bert_forward_pallas(src, params, *, num_heads):
    B, S = src.shape
    emb = params["emb"]
    D = emb.shape[1]

    # generate_mask: (src != 0); key mask broadcast over query positions.
    key_mask = (src != 0).astype(jnp.float32)[:, None, :]          # (B, 1, S)

    # TODO(synk): the data-dependent token-id gather stays in XLA (jnp.take);
    # a per-row DMA gather via scalar-prefetch index_map is the Pallas path for
    # large vocabularies.
    x = jnp.take(emb, src, axis=0)                                  # (B, S, D)
    x = pos_add(x, params["pe"][:S, :])                             # direct PE slice
    # dropout is identity at inference.

    for p in params["layers"]:
        x = _encoder_layer(x, key_mask, p, num_heads)

    logits = linear(x.reshape(B * S, D), params["fc_w"], params["fc_b"])
    return logits.reshape(B, S, -1)


# ---------------------------------------------------------------------------
# Pure-JAX reference (same math, no Pallas) for correctness checking
# ---------------------------------------------------------------------------
def _layernorm_ref(y, g, b, eps=1e-5):
    mean = jnp.mean(y, axis=-1, keepdims=True)
    var = jnp.mean((y - mean) ** 2, axis=-1, keepdims=True)
    return (y - mean) / jnp.sqrt(var + eps) * g + b


def bert_forward_reference(src, params, *, num_heads):
    B, S = src.shape
    emb = params["emb"]
    D = emb.shape[1]
    H = num_heads
    dk = D // H

    mask = (src != 0)[:, None, None, :]                             # (B, 1, 1, S)
    x = jnp.take(emb, src, axis=0) + params["pe"][:S][None]

    for p in params["layers"]:
        def proj(w, b, x=x):
            return (x @ w + b).reshape(B, S, H, dk).transpose(0, 2, 1, 3)
        q, k, v = proj(p["wq"], p["bq"]), proj(p["wk"], p["bk"]), proj(p["wv"], p["bv"])
        s = jnp.einsum("bhqd,bhkd->bhqk", q, k) / math.sqrt(dk)
        s = jnp.where(mask, s, jnp.finfo(s.dtype).min)
        a = jnp.einsum("bhqk,bhkd->bhqd", jax.nn.softmax(s, axis=-1), v)
        a = a.transpose(0, 2, 1, 3).reshape(B, S, D) @ p["wo"] + p["bo"]
        x = _layernorm_ref(x + a, p["ln1_g"], p["ln1_b"])
        h = _gelu_tanh(x @ p["w1"] + p["b1"])
        x = _layernorm_ref(x + h @ p["w2"] + p["b2"], p["ln2_g"], p["ln2_b"])

    return x @ params["fc_w"] + params["fc_b"]


# ---------------------------------------------------------------------------
# Parameter construction (deterministic)
# ---------------------------------------------------------------------------
def init_params(key, *, src_vocab, tgt_vocab, d_model, num_layers, d_ff,
                max_seq_length):
    def dense(k, din, dout):
        kw, kb = jax.random.split(k)
        s = 1.0 / math.sqrt(din)
        return (jax.random.uniform(kw, (din, dout), jnp.float32, -s, s),
                jax.random.uniform(kb, (dout,), jnp.float32, -s, s))

    keys = jax.random.split(key, num_layers + 2)
    params = {"emb": jax.random.normal(keys[0], (src_vocab, d_model), jnp.float32)}

    # Sinusoidal positional-encoding table (fixed buffer in the PyTorch module).
    pos = jnp.arange(max_seq_length, dtype=jnp.float32)[:, None]
    div = jnp.exp(jnp.arange(0, d_model, 2, dtype=jnp.float32)
                  * (-math.log(10000.0) / d_model))
    pe = jnp.zeros((max_seq_length, d_model), jnp.float32)
    pe = pe.at[:, 0::2].set(jnp.sin(pos * div))
    pe = pe.at[:, 1::2].set(jnp.cos(pos * div))
    params["pe"] = pe

    layers = []
    for l in range(num_layers):
        lk = jax.random.split(keys[1 + l], 6)
        wq, bq = dense(lk[0], d_model, d_model)
        wk, bk = dense(lk[1], d_model, d_model)
        wv, bv = dense(lk[2], d_model, d_model)
        wo, bo = dense(lk[3], d_model, d_model)
        w1, b1 = dense(lk[4], d_model, d_ff)
        w2, b2 = dense(lk[5], d_ff, d_model)
        layers.append(dict(
            wq=wq, bq=bq, wk=wk, bk=bk, wv=wv, bv=bv, wo=wo, bo=bo,
            w1=w1, b1=b1, w2=w2, b2=b2,
            ln1_g=jnp.ones((d_model,), jnp.float32),
            ln1_b=jnp.zeros((d_model,), jnp.float32),
            ln2_g=jnp.ones((d_model,), jnp.float32),
            ln2_b=jnp.zeros((d_model,), jnp.float32)))
    params["layers"] = layers

    fc_w, fc_b = dense(keys[-1], d_model, tgt_vocab)
    params["fc_w"], params["fc_b"] = fc_w, fc_b
    return params


if __name__ == "__main__":
    src_vocab, tgt_vocab = 32, 32
    d_model, num_heads, num_layers, d_ff = 32, 4, 2, 64
    max_seq_length = 16
    batch, seq_len = 2, 8

    key = jax.random.PRNGKey(0)
    kp, ks = jax.random.split(key)
    params = init_params(kp, src_vocab=src_vocab, tgt_vocab=tgt_vocab,
                         d_model=d_model, num_layers=num_layers, d_ff=d_ff,
                         max_seq_length=max_seq_length)

    src = jax.random.randint(ks, (batch, seq_len), 1, src_vocab, dtype=jnp.int32)
    src = src.at[1, 6:].set(0)         # a couple of padding tokens -> exercises mask

    fwd = jax.jit(functools.partial(bert_forward_pallas, num_heads=num_heads))
    out = jax.block_until_ready(fwd(src, params))

    ref = bert_forward_reference(src, params, num_heads=num_heads)
    assert out.shape == (batch, seq_len, tgt_vocab)
    # Loose tolerance: MXU f32 matmuls / approx-reciprocal softmax round
    # differently than the XLA reference path.
    assert jnp.allclose(out, ref, atol=5e-2, rtol=5e-2), "mismatch vs pure-JAX reference"

    print("KERNEL_OK")
</pallas_src>

<mosaic_0001>
module attributes {stable_mosaic.version = 11 : i64} {
  func.func @_pos_add_kernel(%arg0: i32, %arg1: memref<1x8x32xf32, #tpu.memory_space<vmem>>, %arg2: memref<8x32xf32, #tpu.memory_space<vmem>>, %arg3: memref<1x8x32xf32, #tpu.memory_space<vmem>>) attributes {dimension_semantics = [#tpu.dimension_semantics<parallel>], iteration_bounds = array<i64: 2>, scalar_prefetch = 0 : i64, scratch_operands = 0 : i64, tpu.core_type = #tpu.core_type<tc>, window_params = [{transform_indices = @transform_0, window_bounds = array<i64: 1, 8, 32>}, {pipeline_mode = #tpu.pipeline_mode<synchronous>, transform_indices = @transform_1, window_bounds = array<i64: 8, 32>}, {transform_indices = @transform_2, window_bounds = array<i64: 1, 8, 32>}]} {
    %c0 = arith.constant 0 : index
    %c0_0 = arith.constant 0 : index
    %c0_1 = arith.constant 0 : index
    %0 = vector.load %arg1[%c0, %c0_0, %c0_1] : memref<1x8x32xf32, #tpu.memory_space<vmem>>, vector<1x8x32xf32>
    %c0_2 = arith.constant 0 : index
    %c0_3 = arith.constant 0 : index
    %1 = vector.load %arg2[%c0_2, %c0_3] : memref<8x32xf32, #tpu.memory_space<vmem>>, vector<8x32xf32>
    %2 = vector.shape_cast %1 : vector<8x32xf32> to vector<1x8x32xf32>
    %3 = arith.addf %0, %2 : vector<1x8x32xf32>
    %c0_4 = arith.constant 0 : index
    %c0_5 = arith.constant 0 : index
    %c0_6 = arith.constant 0 : index
    %4 = vector.load %arg3[%c0_4, %c0_5, %c0_6] : memref<1x8x32xf32, #tpu.memory_space<vmem>>, vector<1x8x32xf32>
    tpu.vector_store %arg3[%c0_4, %c0_5, %c0_6], %3 {strides = array<i32>} : memref<1x8x32xf32, #tpu.memory_space<vmem>>, vector<1x8x32xf32>,
    return
  }
  func.func @transform_0(%arg0: i32) -> (i32, i32, i32) {
    %c0_i32 = arith.constant 0 : i32
    %c0_i32_0 = arith.constant 0 : i32
    %c0_i32_1 = arith.constant 0 : i32
    return %arg0, %c0_i32, %c0_i32_0 : i32, i32, i32
  }
  func.func @transform_1(%arg0: i32) -> (i32, i32) {
    %c0_i32 = arith.constant 0 : i32
    %c0_i32_0 = arith.constant 0 : i32
    %c0_i32_1 = arith.constant 0 : i32
    return %c0_i32, %c0_i32_0 : i32, i32
  }
  func.func @transform_2(%arg0: i32) -> (i32, i32, i32) {
    %c0_i32 = arith.constant 0 : i32
    %c0_i32_0 = arith.constant 0 : i32
    %c0_i32_1 = arith.constant 0 : i32
    return %arg0, %c0_i32, %c0_i32_0 : i32, i32, i32
  }
}

module attributes {stable_mosaic.version = 11 : i64} {
  func.func @_ffn_block_kernel(%arg0: i32, %arg1: memref<16x32xf32, #tpu.memory_space<vmem>>, %arg2: memref<32x64xf32, #tpu.memory_space<vmem>>, %arg3: memref<1x64xf32, #tpu.memory_space<vmem>>, %arg4: memref<64x32xf32, #tpu.memory_space<vmem>>, %arg5: memref<1x32xf32, #tpu.memory_space<vmem>>, %arg6: memref<1x32xf32, #tpu.memory_space<vmem>>, %arg7: memref<1x32xf32, #tpu.memory_space<vmem>>, %arg8: memref<16x32xf32, #tpu.memory_space<vmem>>) attributes {dimension_semantics = [#tpu.dimension_semantics<parallel>], iteration_bounds = array<i64: 1>, scalar_prefetch = 0 : i64, scratch_operands = 0 : i64, tpu.core_type = #tpu.core_type<tc>, window_params = [{transform_indices = @transform_0, window_bounds = array<i64: 16, 32>}, {pipeline_mode = #tpu.pipeline_mode<synchronous>, transform_indices = @transform_1, window_bounds = array<i64: 32, 64>}, {pipeline_mode = #tpu.pipeline_mode<synchronous>, transform_indices = @transform_2, window_bounds = array<i64: 1, 64>}, {pipeline_mode = #tpu.pipeline_mode<synchronous>, transform_indices = @transform_3, window_bounds = array<i64: 64, 32>}, {pipeline_mode = #tpu.pipeline_mode<synchronous>, transform_indices = @transform_4, window_bounds = array<i64: 1, 32>}, {pipeline_mode = #tpu.pipeline_mode<synchronous>, transform_indices = @transform_5, window_bounds = array<i64: 1, 32>}, {pipeline_mode = #tpu.pipeline_mode<synchronous>, transform_indices = @transform_6, window_bounds = array<i64: 1, 32>}, {transform_indices = @transform_7, window_bounds = array<i64: 16, 32>}]} {
    %c0 = arith.constant 0 : index
    %c0_0 = arith.constant 0 : index
    %0 = vector.load %arg1[%c0, %c0_0] : memref<16x32xf32, #tpu.memory_space<vmem>>, vector<16x32xf32>
    %c0_1 = arith.constant 0 : index
    %c0_2 = arith.constant 0 : index
    %1 = vector.load %arg2[%c0_1, %c0_2] : memref<32x64xf32, #tpu.memory_space<vmem>>, vector<32x64xf32>
    %cst = arith.constant dense<0.000000e+00> : vector<16x64xf32>
    %2 = tpu.matmul %0, %1, %cst {dimension_numbers = #tpu.dot_dimension_numbers<[1], [0], [0], [1], [0, 0, 1, 1], [], []>} : vector<16x32xf32>, vector<32x64xf32>, vector<16x64xf32> -> vector<16x64xf32>
    %c0_3 = arith.constant 0 : index
    %c0_4 = arith.constant 0 : index
    %3 = vector.load %arg3[%c0_3, %c0_4] : memref<1x64xf32, #tpu.memory_space<vmem>>, vector<1x64xf32>
    %4 = vector.broadcast %3 : vector<1x64xf32> to vector<16x64xf32>
    %5 = arith.addf %2, %4 : vector<16x64xf32>
    %cst_5 = arith.constant 5.000000e-01 : f32
    %6 = vector.broadcast %cst_5 : f32 to vector<16x64xf32>
    %7 = arith.mulf %6, %5 : vector<16x64xf32>
    %cst_6 = arith.constant 4.471500e-02 : f32
    %8 = vector.broadcast %cst_6 : f32 to vector<16x64xf32>
    %9 = arith.mulf %8, %5 : vector<16x64xf32>
    %10 = arith.mulf %9, %5 : vector<16x64xf32>
    %11 = arith.mulf %10, %5 : vector<16x64xf32>
    %12 = arith.addf %5, %11 : vector<16x64xf32>
    %cst_7 = arith.constant 0.797884583 : f32
    %13 = vector.broadcast %cst_7 : f32 to vector<16x64xf32>
    %14 = arith.mulf %13, %12 : vector<16x64xf32>
    %15 = math.tanh %14 : vector<16x64xf32>
    %cst_8 = arith.constant 1.000000e+00 : f32
    %16 = vector.broadcast %cst_8 : f32 to vector<16x64xf32>
    %17 = arith.addf %16, %15 : vector<16x64xf32>
    %18 = arith.mulf %7, %17 : vector<16x64xf32>
    %c0_9 = arith.constant 0 : index
    %c0_10 = arith.constant 0 : index
    %19 = vector.load %arg4[%c0_9, %c0_10] : memref<64x32xf32, #tpu.memory_space<vmem>>, vector<64x32xf32>
    %cst_11 = arith.constant dense<0.000000e+00> : vector<16x32xf32>
    %20 = tpu.matmul %18, %19, %cst_11 {dimension_numbers = #tpu.dot_dimension_numbers<[1], [0], [0], [1], [0, 0, 1, 1], [], []>} : vector<16x64xf32>, vector<64x32xf32>, vector<16x32xf32> -> vector<16x32xf32>
    %c0_12 = arith.constant 0 : index
    %c0_13 = arith.constant 0 : index
    %21 = vector.load %arg5[%c0_12, %c0_13] : memref<1x32xf32, #tpu.memory_space<vmem>>, vector<1x32xf32>
    %22 = vector.broadcast %21 : vector<1x32xf32> to vector<16x32xf32>
    %23 = arith.addf %20, %22 : vector<16x32xf32>
    %24 = arith.addf %0, %23 : vector<16x32xf32>
    %cst_14 = arith.constant dense<0.000000e+00> : vector<16xf32>
    %25 = vector.multi_reduction <add>, %24, %cst_14 [1] : vector<16x32xf32> to vector<16xf32>
    %26 = vector.shape_cast %25 : vector<16xf32> to vector<16x1xf32>
    %cst_15 = arith.constant 3.200000e+01 : f32
    %27 = vector.broadcast %cst_15 : f32 to vector<16x1xf32>
    %28 = arith.divf %26, %27 : vector<16x1xf32>
    %29 = vector.broadcast %28 : vector<16x1xf32> to vector<16x32xf32>
    %30 = arith.subf %24, %29 : vector<16x32xf32>
    %31 = arith.mulf %30, %30 : vector<16x32xf32>
    %cst_16 = arith.constant dense<0.000000e+00> : vector<16xf32>
    %32 = vector.multi_reduction <add>, %31, %cst_16 [1] : vector<16x32xf32> to vector<16xf32>
    %33 = vector.shape_cast %32 : vector<16xf32> to vector<16x1xf32>
    %cst_17 = arith.constant 3.200000e+01 : f32
    %34 = vector.broadcast %cst_17 : f32 to vector<16x1xf32>
    %35 = arith.divf %33, %34 : vector<16x1xf32>
    %cst_18 = arith.constant 9.99999974E-6 : f32
    %36 = vector.broadcast %cst_18 : f32 to vector<16x1xf32>
    %37 = arith.addf %35, %36 : vector<16x1xf32>
    %38 = math.rsqrt %37 : vector<16x1xf32>
    %39 = vector.broadcast %38 : vector<16x1xf32> to vector<16x32xf32>
    %40 = arith.mulf %30, %39 : vector<16x32xf32>
    %c0_19 = arith.constant 0 : index
    %c0_20 = arith.constant 0 : index
    %41 = vector.load %arg6[%c0_19, %c0_20] : memref<1x32xf32, #tpu.memory_space<vmem>>, vector<1x32xf32>
    %42 = vector.broadcast %41 : vector<1x32xf32> to vector<16x32xf32>
    %43 = arith.mulf %40, %42 : vector<16x32xf32>
    %c0_21 = arith.constant 0 : index
    %c0_22 = arith.constant 0 : index
    %44 = vector.load %arg7[%c0_21, %c0_22] : memref<1x32xf32, #tpu.memory_space<vmem>>, vector<1x32xf32>
    %45 = vector.broadcast %44 : vector<1x32xf32> to vector<16x32xf32>
    %46 = arith.addf %43, %45 : vector<16x32xf32>
    %c0_23 = arith.constant 0 : index
    %c0_24 = arith.constant 0 : index
    %47 = vector.load %arg8[%c0_23, %c0_24] : memref<16x32xf32, #tpu.memory_space<vmem>>, vector<16x32xf32>
    tpu.vector_store %arg8[%c0_23, %c0_24], %46 {strides = array<i32>} : memref<16x32xf32, #tpu.memory_space<vmem>>, vector<16x32xf32>,
    return
  }
  func.func @transform_0(%arg0: i32) -> (i32, i32) {
    %c0_i32 = arith.constant 0 : i32
    %c0_i32_0 = arith.constant 0 : i32
    return %arg0, %c0_i32 : i32, i32
  }
  func.func @transform_1(%arg0: i32) -> (i32, i32) {
    %c0_i32 = arith.constant 0 : i32
    %c0_i32_0 = arith.constant 0 : i32
    %c0_i32_1 = arith.constant 0 : i32
    return %c0_i32, %c0_i32_0 : i32, i32
  }
  func.func @transform_2(%arg0: i32) -> (i32, i32) {
    %c0_i32 = arith.constant 0 : i32
    %c0_i32_0 = arith.constant 0 : i32
    %c0_i32_1 = arith.constant 0 : i32
    return %c0_i32, %c0_i32_0 : i32, i32
  }
  func.func @transform_3(%arg0: i32) -> (i32, i32) {
    %c0_i32 = arith.constant 0 : i32
    %c0_i32_0 = arith.constant 0 : i32
    %c0_i32_1 = arith.constant 0 : i32
    return %c0_i32, %c0_i32_0 : i32, i32
  }
  func.func @transform_4(%arg0: i32) -> (i32, i32) {
    %c0_i32 = arith.constant 0 : i32
    %c0_i32_0 = arith.constant 0 : i32
    %c0_i32_1 = arith.constant 0 : i32
    return %c0_i32, %c0_i32_0 : i32, i32
  }
  func.func @transform_5(%arg0: i32) -> (i32, i32) {
    %c0_i32 = arith.constant 0 : i32
    %c0_i32_0 = arith.constant 0 : i32
    %c0_i32_1 = arith.constant 0 : i32
    return %c0_i32, %c0_i32_0 : i32, i32
  }
  func.func @transform_6(%arg0: i32) -> (i32, i32) {
    %c0_i32 = arith.constant 0 : i32
    %c0_i32_0 = arith.constant 0 : i32
    %c0_i32_1 = arith.constant 0 : i32
    return %c0_i32, %c0_i32_0 : i32, i32
  }
  func.func @transform_7(%arg0: i32) -> (i32, i32) {
    %c0_i32 = arith.constant 0 : i32
    %c0_i32_0 = arith.constant 0 : i32
    return %arg0, %c0_i32 : i32, i32
  }
}

module attributes {stable_mosaic.version = 11 : i64} {
  func.func @_linear_kernel(%arg0: i32, %arg1: memref<16x32xf32, #tpu.memory_space<vmem>>, %arg2: memref<32x32xf32, #tpu.memory_space<vmem>>, %arg3: memref<1x32xf32, #tpu.memory_space<vmem>>, %arg4: memref<16x32xf32, #tpu.memory_space<vmem>>) attributes {dimension_semantics = [#tpu.dimension_semantics<parallel>], iteration_bounds = array<i64: 1>, scalar_prefetch = 0 : i64, scratch_operands = 0 : i64, tpu.core_type = #tpu.core_type<tc>, window_params = [{transform_indices = @transform_0, window_bounds = array<i64: 16, 32>}, {pipeline_mode = #tpu.pipeline_mode<synchronous>, transform_indices = @transform_1, window_bounds = array<i64: 32, 32>}, {pipeline_mode = #tpu.pipeline_mode<synchronous>, transform_indices = @transform_2, window_bounds = array<i64: 1, 32>}, {transform_indices = @transform_3, window_bounds = array<i64: 16, 32>}]} {
    %c0 = arith.constant 0 : index
    %c0_0 = arith.constant 0 : index
    %0 = vector.load %arg1[%c0, %c0_0] : memref<16x32xf32, #tpu.memory_space<vmem>>, vector<16x32xf32>
    %c0_1 = arith.constant 0 : index
    %c0_2 = arith.constant 0 : index
    %1 = vector.load %arg2[%c0_1, %c0_2] : memref<32x32xf32, #tpu.memory_space<vmem>>, vector<32x32xf32>
    %cst = arith.constant dense<0.000000e+00> : vector<16x32xf32>
    %2 = tpu.matmul %0, %1, %cst {dimension_numbers = #tpu.dot_dimension_numbers<[1], [0], [0], [1], [0, 0, 1, 1], [], []>} : vector<16x32xf32>, vector<32x32xf32>, vector<16x32xf32> -> vector<16x32xf32>
    %c0_3 = arith.constant 0 : index
    %c0_4 = arith.constant 0 : index
    %3 = vector.load %arg3[%c0_3, %c0_4] : memref<1x32xf32, #tpu.memory_space<vmem>>, vector<1x32xf32>
    %4 = vector.broadcast %3 : vector<1x32xf32> to vector<16x32xf32>
    %5 = arith.addf %2, %4 : vector<16x32xf32>
    %c0_5 = arith.constant 0 : index
    %c0_6 = arith.constant 0 : index
    %6 = vector.load %arg4[%c0_5, %c0_6] : memref<16x32xf32, #tpu.memory_space<vmem>>, vector<16x32xf32>
    tpu.vector_store %arg4[%c0_5, %c0_6], %5 {strides = array<i32>} : memref<16x32xf32, #tpu.memory_space<vmem>>, vector<16x32xf32>,
    return
  }
  func.func @transform_0(%arg0: i32) -> (i32, i32) {
    %c0_i32 = arith.constant 0 : i32
    %c0_i32_0 = arith.constant 0 : i32
    return %arg0, %c0_i32 : i32, i32
  }
  func.func @transform_1(%arg0: i32) -> (i32, i32) {
    %c0_i32 = arith.constant 0 : i32
    %c0_i32_0 = arith.constant 0 : i32
    %c0_i32_1 = arith.constant 0 : i32
    return %c0_i32, %c0_i32_0 : i32, i32
  }
  func.func @transform_2(%arg0: i32) -> (i32, i32) {
    %c0_i32 = arith.constant 0 : i32
    %c0_i32_0 = arith.constant 0 : i32
    %c0_i32_1 = arith.constant 0 : i32
    return %c0_i32, %c0_i32_0 : i32, i32
  }
  func.func @transform_3(%arg0: i32) -> (i32, i32) {
    %c0_i32 = arith.constant 0 : i32
    %c0_i32_0 = arith.constant 0 : i32
    return %arg0, %c0_i32 : i32, i32
  }
}

module attributes {stable_mosaic.version = 11 : i64} {
  func.func @_attn_block_kernel(%arg0: i32, %arg1: memref<1x8x32xf32, #tpu.memory_space<vmem>>, %arg2: memref<1x1x8xf32, #tpu.memory_space<vmem>>, %arg3: memref<32x96xf32, #tpu.memory_space<vmem>>, %arg4: memref<1x96xf32, #tpu.memory_space<vmem>>, %arg5: memref<32x32xf32, #tpu.memory_space<vmem>>, %arg6: memref<1x32xf32, #tpu.memory_space<vmem>>, %arg7: memref<1x32xf32, #tpu.memory_space<vmem>>, %arg8: memref<1x32xf32, #tpu.memory_space<vmem>>, %arg9: memref<1x8x32xf32, #tpu.memory_space<vmem>>) attributes {dimension_semantics = [#tpu.dimension_semantics<parallel>], iteration_bounds = array<i64: 2>, scalar_prefetch = 0 : i64, scratch_operands = 0 : i64, tpu.core_type = #tpu.core_type<tc>, window_params = [{transform_indices = @transform_0, window_bounds = array<i64: 1, 8, 32>}, {transform_indices = @transform_1, window_bounds = array<i64: 1, 1, 8>}, {pipeline_mode = #tpu.pipeline_mode<synchronous>, transform_indices = @transform_2, window_bounds = array<i64: 32, 96>}, {pipeline_mode = #tpu.pipeline_mode<synchronous>, transform_indices = @transform_3, window_bounds = array<i64: 1, 96>}, {pipeline_mode = #tpu.pipeline_mode<synchronous>, transform_indices = @transform_4, window_bounds = array<i64: 32, 32>}, {pipeline_mode = #tpu.pipeline_mode<synchronous>, transform_indices = @transform_5, window_bounds = array<i64: 1, 32>}, {pipeline_mode = #tpu.pipeline_mode<synchronous>, transform_indices = @transform_6, window_bounds = array<i64: 1, 32>}, {pipeline_mode = #tpu.pipeline_mode<synchronous>, transform_indices = @transform_7, window_bounds = array<i64: 1, 32>}, {transform_indices = @transform_8, window_bounds = array<i64: 1, 8, 32>}]} {
    %c0 = arith.constant 0 : index
    %c0_0 = arith.constant 0 : index
    %c0_1 = arith.constant 0 : index
    %0 = vector.load %arg1[%c0, %c0_0, %c0_1] : memref<1x8x32xf32, #tpu.memory_space<vmem>>, vector<1x8x32xf32>
    %1 = vector.shape_cast %0 : vector<1x8x32xf32> to vector<8x32xf32>
    %c0_2 = arith.constant 0 : index
    %c0_3 = arith.constant 0 : index
    %2 = vector.load %arg3[%c0_2, %c0_3] : memref<32x96xf32, #tpu.memory_space<vmem>>, vector<32x96xf32>
    %cst = arith.constant dense<0.000000e+00> : vector<8x96xf32>
    %3 = tpu.matmul %1, %2, %cst {dimension_numbers = #tpu.dot_dimension_numbers<[1], [0], [0], [1], [0, 0, 1, 1], [], []>} : vector<8x32xf32>, vector<32x96xf32>, vector<8x96xf32> -> vector<8x96xf32>
    %c0_4 = arith.constant 0 : index
    %c0_5 = arith.constant 0 : index
    %4 = vector.load %arg4[%c0_4, %c0_5] : memref<1x96xf32, #tpu.memory_space<vmem>>, vector<1x96xf32>
    %5 = vector.broadcast %4 : vector<1x96xf32> to vector<8x96xf32>
    %6 = arith.addf %3, %5 : vector<8x96xf32>
    %7 = vector.extract_strided_slice %6 {offsets = [0, 0], sizes = [8, 32], strides = [1, 1]} : vector<8x96xf32> to vector<8x32xf32>
    %8 = vector.extract_strided_slice %6 {offsets = [0, 32], sizes = [8, 32], strides = [1, 1]} : vector<8x96xf32> to vector<8x32xf32>
    %9 = vector.extract_strided_slice %6 {offsets = [0, 64], sizes = [8, 32], strides = [1, 1]} : vector<8x96xf32> to vector<8x32xf32>
    %c0_6 = arith.constant 0 : index
    %c0_7 = arith.constant 0 : index
    %c0_8 = arith.constant 0 : index
    %10 = vector.load %arg2[%c0_6, %c0_7, %c0_8] : memref<1x1x8xf32, #tpu.memory_space<vmem>>, vector<1x1x8xf32>
    %11 = vector.shape_cast %10 : vector<1x1x8xf32> to vector<1x8xf32>
    %12 = vector.extract_strided_slice %7 {offsets = [0, 0], sizes = [8, 8], strides = [1, 1]} : vector<8x32xf32> to vector<8x8xf32>
    %13 = vector.extract_strided_slice %8 {offsets = [0, 0], sizes = [8, 8], strides = [1, 1]} : vector<8x32xf32> to vector<8x8xf32>
    %14 = vector.extract_strided_slice %9 {offsets = [0, 0], sizes = [8, 8], strides = [1, 1]} : vector<8x32xf32> to vector<8x8xf32>
    %cst_9 = arith.constant dense<0.000000e+00> : vector<8x8xf32>
    %15 = tpu.matmul %12, %13, %cst_9 {dimension_numbers = #tpu.dot_dimension_numbers<[1], [1], [0], [0], [0, 0, 1, 0], [], []>} : vector<8x8xf32>, vector<8x8xf32>, vector<8x8xf32> -> vector<8x8xf32>
    %cst_10 = arith.constant 0.353553385 : f32
    %16 = vector.broadcast %cst_10 : f32 to vector<8x8xf32>
    %17 = arith.mulf %15, %16 : vector<8x8xf32>
    %cst_11 = arith.constant 0.000000e+00 : f32
    %18 = vector.broadcast %cst_11 : f32 to vector<1x8xf32>
    %19 = arith.cmpf one, %11, %18 : vector<1x8xf32>
    %cst_12 = arith.constant -3.40282347E+38 : f32
    %20 = vector.shape_cast %19 : vector<1x8xi1> to vector<1x8xi1>
    %21 = vector.broadcast %20 : vector<1x8xi1> to vector<8x8xi1>
    %22 = vector.broadcast %cst_12 : f32 to vector<8x8xf32>
    %23 = arith.select %21, %17, %22 : vector<8x8xi1>, vector<8x8xf32>
    %cst_13 = arith.constant dense<0xFF800000> : vector<8xf32>
    %24 = vector.multi_reduction <maximumf>, %23, %cst_13 [1] : vector<8x8xf32> to vector<8xf32>
    %25 = vector.shape_cast %24 : vector<8xf32> to vector<8x1xf32>
    %26 = vector.broadcast %25 : vector<8x1xf32> to vector<8x8xf32>
    %27 = arith.subf %23, %26 : vector<8x8xf32>
    %28 = math.exp %27 : vector<8x8xf32>
    %cst_14 = arith.constant dense<0.000000e+00> : vector<8xf32>
    %29 = vector.multi_reduction <add>, %28, %cst_14 [1] : vector<8x8xf32> to vector<8xf32>
    %30 = vector.shape_cast %29 : vector<8xf32> to vector<8x1xf32>
    %31 = tpu.reciprocal %30 {approx = true} : vector<8x1xf32> -> vector<8x1xf32>
    %32 = vector.broadcast %31 : vector<8x1xf32> to vector<8x8xf32>
    %33 = arith.mulf %28, %32 : vector<8x8xf32>
    %cst_15 = arith.constant dense<0.000000e+00> : vector<8x8xf32>
    %34 = tpu.matmul %33, %14, %cst_15 {dimension_numbers = #tpu.dot_dimension_numbers<[1], [0], [0], [1], [0, 0, 1, 1], [], []>} : vector<8x8xf32>, vector<8x8xf32>, vector<8x8xf32> -> vector<8x8xf32>
    %35 = vector.extract_strided_slice %7 {offsets = [0, 8], sizes = [8, 8], strides = [1, 1]} : vector<8x32xf32> to vector<8x8xf32>
    %36 = vector.extract_strided_slice %8 {offsets = [0, 8], sizes = [8, 8], strides = [1, 1]} : vector<8x32xf32> to vector<8x8xf32>
    %37 = vector.extract_strided_slice %9 {offsets = [0, 8], sizes = [8, 8], strides = [1, 1]} : vector<8x32xf32> to vector<8x8xf32>
    %cst_16 = arith.constant dense<0.000000e+00> : vector<8x8xf32>
    %38 = tpu.matmul %35, %36, %cst_16 {dimension_numbers = #tpu.dot_dimension_numbers<[1], [1], [0], [0], [0, 0, 1, 0], [], []>} : vector<8x8xf32>, vector<8x8xf32>, vector<8x8xf32> -> vector<8x8xf32>
    %cst_17 = arith.constant 0.353553385 : f32
    %39 = vector.broadcast %cst_17 : f32 to vector<8x8xf32>
    %40 = arith.mulf %38, %39 : vector<8x8xf32>
    %cst_18 = arith.constant 0.000000e+00 : f32
    %41 = vector.broadcast %cst_18 : f32 to vector<1x8xf32>
    %42 = arith.cmpf one, %11, %41 : vector<1x8xf32>
    %cst_19 = arith.constant -3.40282347E+38 : f32
    %43 = vector.shape_cast %42 : vector<1x8xi1> to vector<1x8xi1>
    %44 = vector.broadcast %43 : vector<1x8xi1> to vector<8x8xi1>
    %45 = vector.broadcast %cst_19 : f32 to vector<8x8xf32>
    %46 = arith.select %44, %40, %45 : vector<8x8xi1>, vector<8x8xf32>
    %cst_20 = arith.constant dense<0xFF800000> : vector<8xf32>
    %47 = vector.multi_reduction <maximumf>, %46, %cst_20 [1] : vector<8x8xf32> to vector<8xf32>
    %48 = vector.shape_cast %47 : vector<8xf32> to vector<8x1xf32>
    %49 = vector.broadcast %48 : vector<8x1xf32> to vector<8x8xf32>
    %50 = arith.subf %46, %49 : vector<8x8xf32>
    %51 = math.exp %50 : vector<8x8xf32>
    %cst_21 = arith.constant dense<0.000000e+00> : vector<8xf32>
    %52 = vector.multi_reduction <add>, %51, %cst_21 [1] : vector<8x8xf32> to vector<8xf32>
    %53 = vector.shape_cast %52 : vector<8xf32> to vector<8x1xf32>
    %54 = tpu.reciprocal %53 {approx = true} : vector<8x1xf32> -> vector<8x1xf32>
    %55 = vector.broadcast %54 : vector<8x1xf32> to vector<8x8xf32>
    %56 = arith.mulf %51, %55 : vector<8x8xf32>
    %cst_22 = arith.constant dense<0.000000e+00> : vector<8x8xf32>
    %57 = tpu.matmul %56, %37, %cst_22 {dimension_numbers = #tpu.dot_dimension_numbers<[1], [0], [0], [1], [0, 0, 1, 1], [], []>} : vector<8x8xf32>, vector<8x8xf32>, vector<8x8xf32> -> vector<8x8xf32>
    %58 = vector.extract_strided_slice %7 {offsets = [0, 16], sizes = [8, 8], strides = [1, 1]} : vector<8x32xf32> to vector<8x8xf32>
    %59 = vector.extract_strided_slice %8 {offsets = [0, 16], sizes = [8, 8], strides = [1, 1]} : vector<8x32xf32> to vector<8x8xf32>
    %60 = vector.extract_strided_slice %9 {offsets = [0, 16], sizes = [8, 8], strides = [1, 1]} : vector<8x32xf32> to vector<8x8xf32>
    %cst_23 = arith.constant dense<0.000000e+00> : vector<8x8xf32>
    %61 = tpu.matmul %58, %59, %cst_23 {dimension_numbers = #tpu.dot_dimension_numbers<[1], [1], [0], [0], [0, 0, 1, 0], [], []>} : vector<8x8xf32>, vector<8x8xf32>, vector<8x8xf32> -> vector<8x8xf32>
    %cst_24 = arith.constant 0.353553385 : f32
    %62 = vector.broadcast %cst_24 : f32 to vector<8x8xf32>
    %63 = arith.mulf %61, %62 : vector<8x8xf32>
    %cst_25 = arith.constant 0.000000e+00 : f32
    %64 = vector.broadcast %cst_25 : f32 to vector<1x8xf32>
    %65 = arith.cmpf one, %11, %64 : vector<1x8xf32>
    %cst_26 = arith.constant -3.40282347E+38 : f32
    %66 = vector.shape_cast %65 : vector<1x8xi1> to vector<1x8xi1>
    %67 = vector.broadcast %66 : vector<1x8xi1> to vector<8x8xi1>
    %68 = vector.broadcast %cst_26 : f32 to vector<8x8xf32>
    %69 = arith.select %67, %63, %68 : vector<8x8xi1>, vector<8x8xf32>
    %cst_27 = arith.constant dense<0xFF800000> : vector<8xf32>
    %70 = vector.multi_reduction <maximumf>, %69, %cst_27 [1] : vector<8x8xf32> to vector<8xf32>
    %71 = vector.shape_cast %70 : vector<8xf32> to vector<8x1xf32>
    %72 = vector.broadcast %71 : vector<8x1xf32> to vector<8x8xf32>
    %73 = arith.subf %69, %72 : vector<8x8xf32>
    %74 = math.exp %73 : vector<8x8xf32>
    %cst_28 = arith.constant dense<0.000000e+00> : vector<8xf32>
    %75 = vector.multi_reduction <add>, %74, %cst_28 [1] : vector<8x8xf32> to vector<8xf32>
    %76 = vector.shape_cast %75 : vector<8xf32> to vector<8x1xf32>
    %77 = tpu.reciprocal %76 {approx = true} : vector<8x1xf32> -> vector<8x1xf32>
    %78 = vector.broadcast %77 : vector<8x1xf32> to vector<8x8xf32>
    %79 = arith.mulf %74, %78 : vector<8x8xf32>
    %cst_29 = arith.constant dense<0.000000e+00> : vector<8x8xf32>
    %80 = tpu.matmul %79, %60, %cst_29 {dimension_numbers = #tpu.dot_dimension_numbers<[1], [0], [0], [1], [0, 0, 1, 1], [], []>} : vector<8x8xf32>, vector<8x8xf32>, vector<8x8xf32> -> vector<8x8xf32>
    %81 = vector.extract_strided_slice %7 {offsets = [0, 24], sizes = [8, 8], strides = [1, 1]} : vector<8x32xf32> to vector<8x8xf32>
    %82 = vector.extract_strided_slice %8 {offsets = [0, 24], sizes = [8, 8], strides = [1, 1]} : vector<8x32xf32> to vector<8x8xf32>
    %83 = vector.extract_strided_slice %9 {offsets = [0, 24], sizes = [8, 8], strides = [1, 1]} : vector<8x32xf32> to vector<8x8xf32>
    %cst_30 = arith.constant dense<0.000000e+00> : vector<8x8xf32>
    %84 = tpu.matmul %81, %82, %cst_30 {dimension_numbers = #tpu.dot_dimension_numbers<[1], [1], [0], [0], [0, 0, 1, 0], [], []>} : vector<8x8xf32>, vector<8x8xf32>, vector<8x8xf32> -> vector<8x8xf32>
    %cst_31 = arith.constant 0.353553385 : f32
    %85 = vector.broadcast %cst_31 : f32 to vector<8x8xf32>
    %86 = arith.mulf %84, %85 : vector<8x8xf32>
    %cst_32 = arith.constant 0.000000e+00 : f32
    %87 = vector.broadcast %cst_32 : f32 to vector<1x8xf32>
    %88 = arith.cmpf one, %11, %87 : vector<1x8xf32>
    %cst_33 = arith.constant -3.40282347E+38 : f32
    %89 = vector.shape_cast %88 : vector<1x8xi1> to vector<1x8xi1>
    %90 = vector.broadcast %89 : vector<1x8xi1> to vector<8x8xi1>
    %91 = vector.broadcast %cst_33 : f32 to vector<8x8xf32>
    %92 = arith.select %90, %86, %91 : vector<8x8xi1>, vector<8x8xf32>
    %cst_34 = arith.constant dense<0xFF800000> : vector<8xf32>
    %93 = vector.multi_reduction <maximumf>, %92, %cst_34 [1] : vector<8x8xf32> to vector<8xf32>
    %94 = vector.shape_cast %93 : vector<8xf32> to vector<8x1xf32>
    %95 = vector.broadcast %94 : vector<8x1xf32> to vector<8x8xf32>
    %96 = arith.subf %92, %95 : vector<8x8xf32>
    %97 = math.exp %96 : vector<8x8xf32>
    %cst_35 = arith.constant dense<0.000000e+00> : vector<8xf32>
    %98 = vector.multi_reduction <add>, %97, %cst_35 [1] : vector<8x8xf32> to vector<8xf32>
    %99 = vector.shape_cast %98 : vector<8xf32> to vector<8x1xf32>
    %100 = tpu.reciprocal %99 {approx = true} : vector<8x1xf32> -> vector<8x1xf32>
    %101 = vector.broadcast %100 : vector<8x1xf32> to vector<8x8xf32>
    %102 = arith.mulf %97, %101 : vector<8x8xf32>
    %cst_36 = arith.constant dense<0.000000e+00> : vector<8x8xf32>
    %103 = tpu.matmul %102, %83, %cst_36 {dimension_numbers = #tpu.dot_dimension_numbers<[1], [0], [0], [1], [0, 0, 1, 1], [], []>} : vector<8x8xf32>, vector<8x8xf32>, vector<8x8xf32> -> vector<8x8xf32>
    %104 = tpu.concatenate %34, %57, %80, %103 in 1 : vector<8x8xf32>, vector<8x8xf32>, vector<8x8xf32>, vector<8x8xf32> -> vector<8x32xf32>
    %c0_37 = arith.constant 0 : index
    %c0_38 = arith.constant 0 : index
    %105 = vector.load %arg5[%c0_37, %c0_38] : memref<32x32xf32, #tpu.memory_space<vmem>>, vector<32x32xf32>
    %cst_39 = arith.constant dense<0.000000e+00> : vector<8x32xf32>
    %106 = tpu.matmul %104, %105, %cst_39 {dimension_numbers = #tpu.dot_dimension_numbers<[1], [0], [0], [1], [0, 0, 1, 1], [], []>} : vector<8x32xf32>, vector<32x32xf32>, vector<8x32xf32> -> vector<8x32xf32>
    %c0_40 = arith.constant 0 : index
    %c0_41 = arith.constant 0 : index
    %107 = vector.load %arg6[%c0_40, %c0_41] : memref<1x32xf32, #tpu.memory_space<vmem>>, vector<1x32xf32>
    %108 = vector.broadcast %107 : vector<1x32xf32> to vector<8x32xf32>
    %109 = arith.addf %106, %108 : vector<8x32xf32>
    %110 = arith.addf %1, %109 : vector<8x32xf32>
    %cst_42 = arith.constant dense<0.000000e+00> : vector<8xf32>
    %111 = vector.multi_reduction <add>, %110, %cst_42 [1] : vector<8x32xf32> to vector<8xf32>
    %112 = vector.shape_cast %111 : vector<8xf32> to vector<8x1xf32>
    %cst_43 = arith.constant 3.200000e+01 : f32
    %113 = vector.broadcast %cst_43 : f32 to vector<8x1xf32>
    %114 = arith.divf %112, %113 : vector<8x1xf32>
    %115 = vector.broadcast %114 : vector<8x1xf32> to vector<8x32xf32>
    %116 = arith.subf %110, %115 : vector<8x32xf32>
    %117 = arith.mulf %116, %116 : vector<8x32xf32>
    %cst_44 = arith.constant dense<0.000000e+00> : vector<8xf32>
    %118 = vector.multi_reduction <add>, %117, %cst_44 [1] : vector<8x32xf32> to vector<8xf32>
    %119 = vector.shape_cast %118 : vector<8xf32> to vector<8x1xf32>
    %cst_45 = arith.constant 3.200000e+01 : f32
    %120 = vector.broadcast %cst_45 : f32 to vector<8x1xf32>
    %121 = arith.divf %119, %120 : vector<8x1xf32>
    %cst_46 = arith.constant 9.99999974E-6 : f32
    %122 = vector.broadcast %cst_46 : f32 to vector<8x1xf32>
    %123 = arith.addf %121, %122 : vector<8x1xf32>
    %124 = math.rsqrt %123 : vector<8x1xf32>
    %125 = vector.broadcast %124 : vector<8x1xf32> to vector<8x32xf32>
    %126 = arith.mulf %116, %125 : vector<8x32xf32>
    %c0_47 = arith.constant 0 : index
    %c0_48 = arith.constant 0 : index
    %127 = vector.load %arg7[%c0_47, %c0_48] : memref<1x32xf32, #tpu.memory_space<vmem>>, vector<1x32xf32>
    %128 = vector.broadcast %127 : vector<1x32xf32> to vector<8x32xf32>
    %129 = arith.mulf %126, %128 : vector<8x32xf32>
    %c0_49 = arith.constant 0 : index
    %c0_50 = arith.constant 0 : index
    %130 = vector.load %arg8[%c0_49, %c0_50] : memref<1x32xf32, #tpu.memory_space<vmem>>, vector<1x32xf32>
    %131 = vector.broadcast %130 : vector<1x32xf32> to vector<8x32xf32>
    %132 = arith.addf %129, %131 : vector<8x32xf32>
    %c0_51 = arith.constant 0 : index
    %c0_52 = arith.constant 0 : index
    %c0_53 = arith.constant 0 : index
    %133 = vector.load %arg9[%c0_51, %c0_52, %c0_53] : memref<1x8x32xf32, #tpu.memory_space<vmem>>, vector<1x8x32xf32>
    %134 = vector.shape_cast %133 : vector<1x8x32xf32> to vector<8x32xf32>
    %135 = vector.shape_cast %132 : vector<8x32xf32> to vector<1x8x32xf32>
    tpu.vector_store %arg9[%c0_51, %c0_52, %c0_53], %135 {strides = array<i32>} : memref<1x8x32xf32, #tpu.memory_space<vmem>>, vector<1x8x32xf32>,
    return
  }
  func.func @transform_0(%arg0: i32) -> (i32, i32, i32) {
    %c0_i32 = arith.constant 0 : i32
    %c0_i32_0 = arith.constant 0 : i32
    %c0_i32_1 = arith.constant 0 : i32
    return %arg0, %c0_i32, %c0_i32_0 : i32, i32, i32
  }
  func.func @transform_1(%arg0: i32) -> (i32, i32, i32) {
    %c0_i32 = arith.constant 0 : i32
    %c0_i32_0 = arith.constant 0 : i32
    %c0_i32_1 = arith.constant 0 : i32
    return %arg0, %c0_i32, %c0_i32_0 : i32, i32, i32
  }
  func.func @transform_2(%arg0: i32) -> (i32, i32) {
    %c0_i32 = arith.constant 0 : i32
    %c0_i32_0 = arith.constant 0 : i32
    %c0_i32_1 = arith.constant 0 : i32
    return %c0_i32, %c0_i32_0 : i32, i32
  }
  func.func @transform_3(%arg0: i32) -> (i32, i32) {
    %c0_i32 = arith.constant 0 : i32
    %c0_i32_0 = arith.constant 0 : i32
    %c0_i32_1 = arith.constant 0 : i32
    return %c0_i32, %c0_i32_0 : i32, i32
  }
  func.func @transform_4(%arg0: i32) -> (i32, i32) {
    %c0_i32 = arith.constant 0 : i32
    %c0_i32_0 = arith.constant 0 : i32
    %c0_i32_1 = arith.constant 0 : i32
    return %c0_i32, %c0_i32_0 : i32, i32
  }
  func.func @transform_5(%arg0: i32) -> (i32, i32) {
    %c0_i32 = arith.constant 0 : i32
    %c0_i32_0 = arith.constant 0 : i32
    %c0_i32_1 = arith.constant 0 : i32
    return %c0_i32, %c0_i32_0 : i32, i32
  }
  func.func @transform_6(%arg0: i32) -> (i32, i32) {
    %c0_i32 = arith.constant 0 : i32
    %c0_i32_0 = arith.constant 0 : i32
    %c0_i32_1 = arith.constant 0 : i32
    return %c0_i32, %c0_i32_0 : i32, i32
  }
  func.func @transform_7(%arg0: i32) -> (i32, i32) {
    %c0_i32 = arith.constant 0 : i32
    %c0_i32_0 = arith.constant 0 : i32
    %c0_i32_1 = arith.constant 0 : i32
    return %c0_i32, %c0_i32_0 : i32, i32
  }
  func.func @transform_8(%arg0: i32) -> (i32, i32, i32) {
    %c0_i32 = arith.constant 0 : i32
    %c0_i32_0 = arith.constant 0 : i32
    %c0_i32_1 = arith.constant 0 : i32
    return %arg0, %c0_i32, %c0_i32_0 : i32, i32, i32
  }
}

</mosaic_0001>

<llo_original>
// kernel: bert_forward_pallas.6
$region0: #{bert_forward_pallas.6}
  #allocation0 [shape = 'u32[]', space=smem, size = 0x4, offset = 0x4, fixed_abs, tag = 'smem constant byte address 0x4 - core index']
  #allocation1 [shape = 'u32[144,128]{1,0:T(1,128)}', space=vmem, size = 0x12000, scoped, tag = 'internal scratch']
  %s0 = inlined_call_operand.vmem [shape: f32[2,8,32], index: 0, kind: input, shape index: {}]
  %s1 = inlined_call_operand.vmem [shape: f32[8,32], index: 1, kind: input, shape index: {}]
  %s2 = inlined_call_operand.vmem [shape: f32[2,8,32], index: 2, kind: output, shape index: {}]
  %s3 = sld [smem:[#allocation0]]
  $region41: #{bert_forward_pallas.6} parent=0
    _
  %s5 = ssub.s32 1, %s3
  %s6 = scalar_select 0, %s5, %s3
  loop: start=0, step=1, limit=4
  $region2: #{bert_forward_pallas.6} parent=0 // loop_pre_header
    _
  $region3: #{bert_forward_pallas.6} parent=0 // loop_header
    %s8 = sphi 0, %s12
    %p9 = scmp.ge.s32.totalorder %s8, 4
    %s18 = sphi 0, %s20
    %s21 = sphi 0, %s18
    %s22 = sphi 0, %s21
    %s38 = sphi 0, %s22
    %s42 = sphi 0, %s42
    %s44 = sphi 0, %s42
    %s45 = sphi 0, %s44
    %s59 = sphi 0, %s45
    %s65 = sphi 0, %s67
    %s68 = sphi 0, %s65
    %s69 = sphi 0, %s68
    %s85 = sphi 0, %s69
  $region4: #{bert_forward_pallas.6} parent=0 // loop_header_branch
    %11 = sbr.rel (%p9) target = $region8
  $region5: #{bert_forward_pallas.6} parent=0 // loop_body
    %s13 = ssub.s32 %s8, 1
    %s14 = ssub.s32 %s8, 2
    %s15 = sadd.s32 %s8, 1
    %s16 = ssub.s32 %s8, %s15
    %p17 = scmp.eq.s32.totalorder %s16, 0
    %s19 = sadd.s32 %s18, 1
    %s20 = scalar_select %p17, %s18, %s19
    %p23 = pneg %p17
    %p24 = scmp.eq.s32.totalorder %s8, 1
    %p25 = por %p23, %p24
    %p26 = scmp.ne.s32.totalorder %s18, %s21
    %p27 = scmp.eq.s32.totalorder %s8, 0
    %p28 = por %p26, %p27
    %p29 = scmp.ne.s32.totalorder %s18, %s21
    %p30 = scmp.eq.s32.totalorder %s13, 1
    %p31 = por %p29, %p30
    %p32 = scmp.ne.s32.totalorder %s21, %s22
    %p33 = scmp.eq.s32.totalorder %s13, 0
    %p34 = por %p32, %p33
    %p35 = scmp.ne.s32.totalorder %s21, %s22
    %p36 = scmp.eq.s32.totalorder %s14, 1
    %p37 = por %p35, %p36
    %p39 = scmp.ne.s32.totalorder %s22, %s38
    %p40 = scmp.eq.s32.totalorder %s14, 0
    %p41 = por %p39, %p40
    %s43 = sadd.s32 %s42, 1
    %p46 = scmp.eq.s32.totalorder %s8, 1
    %p47 = scmp.ne.s32.totalorder %s42, %s44
    %p48 = scmp.eq.s32.totalorder %s8, 0
    %p49 = por %p47, %p48
    %p50 = scmp.ne.s32.totalorder %s42, %s44
    %p51 = scmp.eq.s32.totalorder %s13, 1
    %p52 = por %p50, %p51
    %p53 = scmp.ne.s32.totalorder %s44, %s45
    %p54 = scmp.eq.s32.totalorder %s13, 0
    %p55 = por %p53, %p54
    %p56 = scmp.ne.s32.totalorder %s44, %s45
    %p57 = scmp.eq.s32.totalorder %s14, 1
    %p58 = por %p56, %p57
    %p60 = scmp.ne.s32.totalorder %s45, %s59
    %p61 = scmp.eq.s32.totalorder %s14, 0
    %p62 = por %p60, %p61
    %s63 = ssub.s32 %s8, %s15
    %p64 = scmp.eq.s32.totalorder %s63, 0
    %s66 = sadd.s32 %s65, 1
    %s67 = scalar_select %p64, %s65, %s66
    %p70 = pneg %p64
    %p71 = scmp.eq.s32.totalorder %s8, 1
    %p72 = por %p70, %p71
    %p73 = scmp.ne.s32.totalorder %s65, %s68
    %p74 = scmp.eq.s32.totalorder %s8, 0
    %p75 = por %p73, %p74
    %p76 = scmp.ne.s32.totalorder %s65, %s68
    %p77 = scmp.eq.s32.totalorder %s13, 1
    %p78 = por %p76, %p77
    %p79 = scmp.ne.s32.totalorder %s68, %s69
    %p80 = scmp.eq.s32.totalorder %s13, 0
    %p81 = por %p79, %p80
    %p82 = scmp.ne.s32.totalorder %s68, %s69
    %p83 = scmp.eq.s32.totalorder %s14, 1
    %p84 = por %p82, %p83
    %p86 = scmp.ne.s32.totalorder %s69, %s85
    %p87 = scmp.eq.s32.totalorder %s14, 0
    %p88 = por %p86, %p87
    %p89 = scmp.le.s32.totalorder 1, %s8
    %p90 = scmp.lt.s32.totalorder %s8, 3
    %p91 = pnand %p89, %p90
    %p92 = pneg %p91
    // Predicated region
    $region9: #{bert_forward_pallas.6} parent=5 // pred_check
      _
    $region10: #{bert_forward_pallas.6} parent=5 // pred_check_branch
      %94 = sbr.rel (%p91) target = $region12
    $region11: #{bert_forward_pallas.6} parent=5 // pred_region
      %s95 = ssub.s32 %s8, 1
      // Predicated region
      $region13: #{bert_forward_pallas.6} parent=11 // pred_check
        %p96 = pneg %p55
      $region14: #{bert_forward_pallas.6} parent=11 // pred_check_branch
        %98 = sbr.rel (%p96) target = $region16
      $region15: #{bert_forward_pallas.6} parent=11 // pred_region
        _
      $region16: #{bert_forward_pallas.6} parent=11 // pred_fallthru
        _
    $region12: #{bert_forward_pallas.6} parent=5 // pred_fallthru
      _
    %p99 = scmp.lt.s32.totalorder %s8, 2
    // Predicated region
    $region17: #{bert_forward_pallas.6} parent=5 // pred_check
      %p100 = pneg %p99
    $region18: #{bert_forward_pallas.6} parent=5 // pred_check_branch
      %102 = sbr.rel (%p100) target = $region20
    $region19: #{bert_forward_pallas.6} parent=5 // pred_region
      // Predicated region
      $region21: #{bert_forward_pallas.6} parent=19 // pred_check
        %p103 = pneg %p28
      $region22: #{bert_forward_pallas.6} parent=19 // pred_check_branch
        %105 = sbr.rel (%p103) target = $region24
      $region23: #{bert_forward_pallas.6} parent=19 // pred_region
        %p106 = scmp.lt.s32.totalorder %s8, 1
        %s107 = scalar_select %p106, %s8, 1
        %s108 = smul.addr %s107, 8
        %s109 = scalar_lea.vmem %s0, %s108
      $region24: #{bert_forward_pallas.6} parent=19 // pred_fallthru
        _
    $region20: #{bert_forward_pallas.6} parent=5 // pred_fallthru
      _
    %p110 = scmp.le.s32.totalorder 1, %s8
    %p111 = scmp.lt.s32.totalorder %s8, 3
    %p112 = pnand %p110, %p111
    %p113 = pneg %p112
    // Predicated region
    $region25: #{bert_forward_pallas.6} parent=5 // pred_check
      _
    $region26: #{bert_forward_pallas.6} parent=5 // pred_check_branch
      %115 = sbr.rel (%p112) target = $region28
    $region27: #{bert_forward_pallas.6} parent=5 // pred_region
      %s116 = ssub.s32 %s8, 1
      %p117 = scmp.lt.s32.totalorder %s13, 1
      %s118 = scalar_select %p117, %s13, 1
      %s119 = smul.addr %s118, 8
      %s120 = scalar_lea.vmem %s0, %s119
      %p121 = pneg %p34
      %p122 = pneg %p31
      %p123 = pneg %p55
      %p124 = pneg %p52
      %p125 = pneg %p81
      %p126 = pneg %p78
      %p127 = scmp.lt.s32.totalorder %s13, 1
      %s128 = scalar_select %p127, %s13, 1
      %s129 = smul.addr %s128, 8
      %s130 = scalar_lea.vmem %s2, %s129
      %p131 = scmp.lt.s32.totalorder %s13, 1
      %s132 = scalar_select %p131, %s13, 1
      %s133 = smul.addr %s132, 8
      %s134 = scalar_lea.vmem %s0, %s133
      %p135 = scmp.lt.s32.totalorder %s13, 1
      %s136 = scalar_select %p135, %s13, 1
      %s137 = smul.addr %s136, 8
      %s138 = scalar_lea.vmem %s2, %s137
      %v139 = vld [vmem:[%s134] sm:$0xff]
      %v140 = vld [vmem:[%s1] sm:$0xff]
      %v141 = vadd.f32 %v139, %v140
      %vm142 = vcmask 261120
      %143 = vst.msk [vmem:[%s138] sm:$0xff] %vm142, %v141
      %p144 = scmp.lt.s32.totalorder %s13, 1
      %s145 = scalar_select %p144, %s13, 1
      %s146 = smul.addr %s145, 8
      %s147 = scalar_lea.vmem %s2, %s146
      // Predicated region
      $region29: #{bert_forward_pallas.6} parent=27 // pred_check
        %p148 = pneg %p78
      $region30: #{bert_forward_pallas.6} parent=27 // pred_check_branch
        %150 = sbr.rel (%p148) target = $region32
      $region31: #{bert_forward_pallas.6} parent=27 // pred_region
        _
      $region32: #{bert_forward_pallas.6} parent=27 // pred_fallthru
        _
    $region28: #{bert_forward_pallas.6} parent=5 // pred_fallthru
      _
    %p151 = scmp.le.s32.totalorder 2, %s8
    // Predicated region
    $region33: #{bert_forward_pallas.6} parent=5 // pred_check
      %p152 = pneg %p151
    $region34: #{bert_forward_pallas.6} parent=5 // pred_check_branch
      %154 = sbr.rel (%p152) target = $region36
    $region35: #{bert_forward_pallas.6} parent=5 // pred_region
      %s155 = ssub.s32 %s8, 2
      // Predicated region
      $region37: #{bert_forward_pallas.6} parent=35 // pred_check
        %p156 = pneg %p84
      $region38: #{bert_forward_pallas.6} parent=35 // pred_check_branch
        %158 = sbr.rel (%p156) target = $region40
      $region39: #{bert_forward_pallas.6} parent=35 // pred_region
        %p159 = scmp.lt.s32.totalorder %s14, 1
        %s160 = scalar_select %p159, %s14, 1
        %s161 = smul.addr %s160, 8
        %s162 = scalar_lea.vmem %s2, %s161
      $region40: #{bert_forward_pallas.6} parent=35 // pred_fallthru
        _
    $region36: #{bert_forward_pallas.6} parent=5 // pred_fallthru
      _
  $region6: #{bert_forward_pallas.6} parent=0 // loop_footer
    %s12 = sadd.s32 1, %s8
  $region7: #{bert_forward_pallas.6} parent=0 // loop_footer_branch
    %7 = sbr.rel target = $region3
  $region8: #{bert_forward_pallas.6} parent=0 // loop_exit
    _

// kernel: bert_forward_pallas.11
$region0: #{bert_forward_pallas.11}
  #allocation0 [shape = 'u32[]', space=smem, size = 0x4, offset = 0x4, fixed_abs, tag = 'smem constant byte address 0x4 - core index']
  #allocation1 [shape = 'u32[144,128]{1,0:T(1,128)}', space=vmem, size = 0x12000, scoped, tag = 'internal scratch']
  %s0 = inlined_call_operand.vmem [shape: f32[16,32], index: 0, kind: input, shape index: {}]
  %s1 = inlined_call_operand.vmem [shape: f32[32,32], index: 1, kind: input, shape index: {}]
  %s2 = inlined_call_operand.vmem [shape: f32[1,32], index: 2, kind: input, shape index: {}]
  %s3 = inlined_call_operand.hbm [shape: f32[16,32], index: 3, kind: output, shape index: {}]
  %s4 = sld [smem:[#allocation0]]
  $region22: #{bert_forward_pallas.11} parent=0
    _
  %s6 = ssub.s32 1, %s4
  %s7 = scalar_select 0, %s6, %s4
  $region1: #{bert_forward_pallas.11} parent=0
    #allocation2 [shape = 'u8[8192]{0}', space=vmem, size = 0x2000, scoped, tag = 'output window, operand 0, single buffered']
    #allocation3 [shape = 's32[1]{0}', space=sflag, size = 0x4, scoped, tag = 'scoped memory for bert_forward_pallas.11']
    %8 = vsyncpa [#allocation3], 0
    // Predicated region
    $region2: #{bert_forward_pallas.11} parent=1 // pred_check
      _
    $region3: #{bert_forward_pallas.11} parent=1 // pred_check_branch
      %10 = sbr.rel (0) target = $region5
    $region4: #{bert_forward_pallas.11} parent=1 // pred_region
      _
    $region5: #{bert_forward_pallas.11} parent=1 // pred_fallthru
      _
    // Predicated region
    $region6: #{bert_forward_pallas.11} parent=1 // pred_check
      _
    $region7: #{bert_forward_pallas.11} parent=1 // pred_check_branch
      %12 = sbr.rel (0) target = $region9
    $region8: #{bert_forward_pallas.11} parent=1 // pred_region
      _
    $region9: #{bert_forward_pallas.11} parent=1 // pred_fallthru
      _
    // Predicated region
    $region10: #{bert_forward_pallas.11} parent=1 // pred_check
      _
    $region11: #{bert_forward_pallas.11} parent=1 // pred_check_branch
      %14 = sbr.rel (0) target = $region13
    $region12: #{bert_forward_pallas.11} parent=1 // pred_region
      _
    $region13: #{bert_forward_pallas.11} parent=1 // pred_fallthru
      _
    %v15 = vld [vmem:[%s0] sm:$0xff]
    %v16 = vld [vmem:[%s0 + $0x8] sm:$0xff]
    %v17 = vld [vmem:[%s1] sm:$0xff]
    %v18 = vld [vmem:[%s1 + $0x8] sm:$0xff]
    %v19 = vld [vmem:[%s1 + $0x10] sm:$0xff]
    %v20 = vld [vmem:[%s1 + $0x18] sm:$0xff]
    %v21 = vld [vmem:[%s2] sm:$0x1]
    %v23 = vlaneseq
    %v24 = vshrl.u32 %v23, 7
    %v25 = vsub.s32 0, %v24
    %v26 = vrot.slane %v21, %v25
    %vm28 = vcmask 261120
    %v30 = vsel %vm28, %v15, 0
    %v33 = vsel %vm28, %v16, 0
    %35 = vmatprep.subr.mxu0 0.0
    %36 = vmatpush1.msra.mxu0 %v17
    %37 = vmatprep.subr.mxu0 0.0
    %38 = vmatpush1.msra.mxu0 %v18
    %39 = vmatprep.subr.mxu0 0.0
    %40 = vmatpush1.msra.mxu0 %v19
    %41 = vmatprep.subr.mxu0 0.0
    %42 = vmatpush1.msra.mxu0 %v20
    %43 = vmatprep.subr.mxu0 0.0
    %44 = vmatpush1.msra.mxu0 0.0
    %45 = vmatprep.subr.mxu0 0.0
    %46 = vmatpush1.msra.mxu0 0.0
    %47 = vmatprep.subr.mxu0 0.0
    %48 = vmatpush1.msra.mxu0 0.0
    %49 = vmatprep.subr.mxu0 0.0
    %50 = vmatpush1.msra.mxu0 0.0
    %51 = vmatprep.subr.mxu0 0.0
    %52 = vmatpush1.msra.mxu0 0.0
    %53 = vmatprep.subr.mxu0 0.0
    %54 = vmatpush1.msra.mxu0 0.0
    %55 = vmatprep.subr.mxu0 0.0
    %56 = vmatpush1.msra.mxu0 0.0
    %57 = vmatprep.subr.mxu0 0.0
    %58 = vmatpush1.msra.mxu0 0.0
    %59 = vmatprep.subr.mxu0 0.0
    %60 = vmatpush1.msra.mxu0 0.0
    %61 = vmatprep.subr.mxu0 0.0
    %62 = vmatpush1.msra.mxu0 0.0
    %63 = vmatprep.subr.mxu0 0.0
    %64 = vmatpush1.msra.mxu0 0.0
    %65 = vmatprep.subr.mxu0 0.0
    %66 = vmatpush1.msra.mxu0 0.0
    %67 = vmatprep.subr.mxu0 0.0
    %68 = vmatpush1.msra.mxu0 0.0
    %69 = vmatprep.subr.mxu0 0.0
    %70 = vmatpush1.msra.mxu0 0.0
    %71 = vmatprep.subr.mxu0 0.0
    %72 = vmatpush1.msra.mxu0 0.0
    %73 = vmatprep.subr.mxu0 0.0
    %74 = vmatpush1.msra.mxu0 0.0
    %75 = vmatprep.subr.mxu0 0.0
    %76 = vmatpush1.msra.mxu0 0.0
    %77 = vmatprep.subr.mxu0 0.0
    %78 = vmatpush1.msra.mxu0 0.0
    %79 = vmatprep.subr.mxu0 0.0
    %80 = vmatpush1.msra.mxu0 0.0
    %81 = vmatprep.subr.mxu0 0.0
    %82 = vmatpush1.msra.mxu0 0.0
    %83 = vmatprep.subr.mxu0 0.0
    %84 = vmatpush1.msra.mxu0 0.0
    %85 = vmatprep.subr.mxu0 0.0
    %86 = vmatpush1.msra.mxu0 0.0
    %87 = vmatprep.subr.mxu0 0.0
    %88 = vmatpush1.msra.mxu0 0.0
    %89 = vmatprep.subr.mxu0 0.0
    %90 = vmatpush1.msra.mxu0 0.0
    %91 = vmatprep.subr.mxu0 0.0
    %92 = vmatpush1.msra.mxu0 0.0
    %93 = vmatprep.subr.mxu0 0.0
    %94 = vmatpush1.msra.mxu0 0.0
    %95 = vmatprep.subr.mxu0 0.0
    %96 = vmatpush1.msra.mxu0 0.0
    %97 = vmatprep.subr.mxu0 0.0
    %98 = vmatpush1.msra.mxu0 0.0
    %99 = vmatprep.mubr.f32.mxu0 0.0
    %100 = vmatmul.mubr.f32.gmra.mrb[0].mxu0 %v30
    %v101 = vpop.f32.mrb[0].mxu0
    %v102 = vadd.f32 %v26, %v101
    %v103 = vpop.f32.mrb[0].mxu0
    %104 = vmatprep.mubr.f32.mxu0 0.0
    %105 = vmatmul.mubr.f32.gmra.mrb[0].mxu0 %v33
    %v106 = vpop.f32.mrb[0].mxu0
    %v107 = vadd.f32 %v26, %v106
    %v108 = vpop.f32.mrb[0].mxu0
    %109 = vdwg.mxu0
    %110 = vst.msk [vmem:[#allocation2] sm:$0xff] %vm28, %v102
    %111 = vst.msk [vmem:[#allocation2 + $0x8] sm:$0xff] %vm28, %v107
    // Predicated region
    $region14: #{bert_forward_pallas.11} parent=1 // pred_check
      _
    $region15: #{bert_forward_pallas.11} parent=1 // pred_check_branch
      %113 = sbr.rel (0) target = $region17
    $region16: #{bert_forward_pallas.11} parent=1 // pred_region
      %s115 = ssub.s32 256, 256
      %116 = vsyncadd [#allocation3], %s115
      %s117 = sshll.u32 [#allocation2], 4
      %s118 = int_to_ptr.vmem [resolvable:$true] %s117
      %123 = dma.vmem_to_hbm [thread:$0]  %s118, 256, %s3, [#allocation3], 128, 128, 8
    $region17: #{bert_forward_pallas.11} parent=1 // pred_fallthru
      _
    // Predicated region
    $region18: #{bert_forward_pallas.11} parent=1 // pred_check
      _
    $region19: #{bert_forward_pallas.11} parent=1 // pred_check_branch
      %125 = sbr.rel (0) target = $region21
    $region20: #{bert_forward_pallas.11} parent=1 // pred_region
      %126 = dma.done [#allocation3], 256
    $region21: #{bert_forward_pallas.11} parent=1 // pred_fallthru
      _
    %127 = vsyncpa [#allocation3], 1

// kernel: bert_forward_pallas.8
$region0: #{bert_forward_pallas.8}
  #allocation0 [shape = 'u32[]', space=smem, size = 0x4, offset = 0x4, fixed_abs, tag = 'smem constant byte address 0x4 - core index']
  #allocation1 [shape = 'u32[144,128]{1,0:T(1,128)}', space=vmem, size = 0x12000, scoped, tag = 'internal scratch']
  %s0 = inlined_call_operand.vmem [shape: f32[16,32], index: 0, kind: input, shape index: {}]
  %s1 = inlined_call_operand.vmem [shape: f32[32,64], index: 1, kind: input, shape index: {}]
  %s2 = inlined_call_operand.vmem [shape: f32[1,64], index: 2, kind: input, shape index: {}]
  %s3 = inlined_call_operand.vmem [shape: f32[64,32], index: 3, kind: input, shape index: {}]
  %s4 = inlined_call_operand.vmem [shape: f32[1,32], index: 4, kind: input, shape index: {}]
  %s5 = inlined_call_operand.vmem [shape: f32[1,32], index: 5, kind: input, shape index: {}]
  %s6 = inlined_call_operand.vmem [shape: f32[1,32], index: 6, kind: input, shape index: {}]
  %s7 = inlined_call_operand.vmem [shape: f32[16,32], index: 7, kind: output, shape index: {}]
  %s8 = sld [smem:[#allocation0]]
  $region38: #{bert_forward_pallas.8} parent=0
    _
  %s10 = ssub.s32 1, %s8
  %s11 = scalar_select 0, %s10, %s8
  // Predicated region
  $region2: #{bert_forward_pallas.8} parent=0 // pred_check
    _
  $region3: #{bert_forward_pallas.8} parent=0 // pred_check_branch
    %13 = sbr.rel (0) target = $region5
  $region4: #{bert_forward_pallas.8} parent=0 // pred_region
    _
  $region5: #{bert_forward_pallas.8} parent=0 // pred_fallthru
    _
  // Predicated region
  $region6: #{bert_forward_pallas.8} parent=0 // pred_check
    _
  $region7: #{bert_forward_pallas.8} parent=0 // pred_check_branch
    %15 = sbr.rel (0) target = $region9
  $region8: #{bert_forward_pallas.8} parent=0 // pred_region
    _
  $region9: #{bert_forward_pallas.8} parent=0 // pred_fallthru
    _
  // Predicated region
  $region10: #{bert_forward_pallas.8} parent=0 // pred_check
    _
  $region11: #{bert_forward_pallas.8} parent=0 // pred_check_branch
    %17 = sbr.rel (0) target = $region13
  $region12: #{bert_forward_pallas.8} parent=0 // pred_region
    _
  $region13: #{bert_forward_pallas.8} parent=0 // pred_fallthru
    _
  // Predicated region
  $region14: #{bert_forward_pallas.8} parent=0 // pred_check
    _
  $region15: #{bert_forward_pallas.8} parent=0 // pred_check_branch
    %19 = sbr.rel (0) target = $region17
  $region16: #{bert_forward_pallas.8} parent=0 // pred_region
    _
  $region17: #{bert_forward_pallas.8} parent=0 // pred_fallthru
    _
  // Predicated region
  $region18: #{bert_forward_pallas.8} parent=0 // pred_check
    _
  $region19: #{bert_forward_pallas.8} parent=0 // pred_check_branch
    %21 = sbr.rel (0) target = $region21
  $region20: #{bert_forward_pallas.8} parent=0 // pred_region
    _
  $region21: #{bert_forward_pallas.8} parent=0 // pred_fallthru
    _
  // Predicated region
  $region22: #{bert_forward_pallas.8} parent=0 // pred_check
    _
  $region23: #{bert_forward_pallas.8} parent=0 // pred_check_branch
    %23 = sbr.rel (0) target = $region25
  $region24: #{bert_forward_pallas.8} parent=0 // pred_region
    _
  $region25: #{bert_forward_pallas.8} parent=0 // pred_fallthru
    _
  // Predicated region
  $region26: #{bert_forward_pallas.8} parent=0 // pred_check
    _
  $region27: #{bert_forward_pallas.8} parent=0 // pred_check_branch
    %25 = sbr.rel (0) target = $region29
  $region28: #{bert_forward_pallas.8} parent=0 // pred_region
    _
  $region29: #{bert_forward_pallas.8} parent=0 // pred_fallthru
    _
  %v26 = vld [vmem:[%s0] sm:$0xff]
  %v27 = vld [vmem:[%s0 + $0x8] sm:$0xff]
  %v28 = vld [vmem:[%s1] sm:$0xff]
  %v29 = vld [vmem:[%s1 + $0x8] sm:$0xff]
  %v30 = vld [vmem:[%s1 + $0x10] sm:$0xff]
  %v31 = vld [vmem:[%s1 + $0x18] sm:$0xff]
  %v32 = vld [vmem:[%s2] sm:$0x1]
  %v34 = vlaneseq
  %v35 = vshrl.u32 %v34, 7
  %v36 = vsub.s32 0, %v35
  %v37 = vrot.slane %v32, %v36
  %vm39 = vcmask 261120
  %v41 = vsel %vm39, %v26, 0
  %v44 = vsel %vm39, %v27, 0
  %46 = vmatprep.subr.mxu0 0.0
  %47 = vmatpush1.msra.mxu0 %v28
  %48 = vmatprep.subr.mxu0 0.0
  %49 = vmatpush1.msra.mxu0 %v29
  %50 = vmatprep.subr.mxu0 0.0
  %51 = vmatpush1.msra.mxu0 %v30
  %52 = vmatprep.subr.mxu0 0.0
  %53 = vmatpush1.msra.mxu0 %v31
  %54 = vmatprep.subr.mxu0 0.0
  %55 = vmatpush1.msra.mxu0 0.0
  %56 = vmatprep.subr.mxu0 0.0
  %57 = vmatpush1.msra.mxu0 0.0
  %58 = vmatprep.subr.mxu0 0.0
  %59 = vmatpush1.msra.mxu0 0.0
  %60 = vmatprep.subr.mxu0 0.0
  %61 = vmatpush1.msra.mxu0 0.0
  %62 = vmatprep.subr.mxu0 0.0
  %63 = vmatpush1.msra.mxu0 0.0
  %64 = vmatprep.subr.mxu0 0.0
  %65 = vmatpush1.msra.mxu0 0.0
  %66 = vmatprep.subr.mxu0 0.0
  %67 = vmatpush1.msra.mxu0 0.0
  %68 = vmatprep.subr.mxu0 0.0
  %69 = vmatpush1.msra.mxu0 0.0
  %70 = vmatprep.subr.mxu0 0.0
  %71 = vmatpush1.msra.mxu0 0.0
  %72 = vmatprep.subr.mxu0 0.0
  %73 = vmatpush1.msra.mxu0 0.0
  %74 = vmatprep.subr.mxu0 0.0
  %75 = vmatpush1.msra.mxu0 0.0
  %76 = vmatprep.subr.mxu0 0.0
  %77 = vmatpush1.msra.mxu0 0.0
  %78 = vmatprep.subr.mxu0 0.0
  %79 = vmatpush1.msra.mxu0 0.0
  %80 = vmatprep.subr.mxu0 0.0
  %81 = vmatpush1.msra.mxu0 0.0
  %82 = vmatprep.subr.mxu0 0.0
  %83 = vmatpush1.msra.mxu0 0.0
  %84 = vmatprep.subr.mxu0 0.0
  %85 = vmatpush1.msra.mxu0 0.0
  %86 = vmatprep.subr.mxu0 0.0
  %87 = vmatpush1.msra.mxu0 0.0
  %88 = vmatprep.subr.mxu0 0.0
  %89 = vmatpush1.msra.mxu0 0.0
  %90 = vmatprep.subr.mxu0 0.0
  %91 = vmatpush1.msra.mxu0 0.0
  %92 = vmatprep.subr.mxu0 0.0
  %93 = vmatpush1.msra.mxu0 0.0
  %94 = vmatprep.subr.mxu0 0.0
  %95 = vmatpush1.msra.mxu0 0.0
  %96 = vmatprep.subr.mxu0 0.0
  %97 = vmatpush1.msra.mxu0 0.0
  %98 = vmatprep.subr.mxu0 0.0
  %99 = vmatpush1.msra.mxu0 0.0
  %100 = vmatprep.subr.mxu0 0.0
  %101 = vmatpush1.msra.mxu0 0.0
  %102 = vmatprep.subr.mxu0 0.0
  %103 = vmatpush1.msra.mxu0 0.0
  %104 = vmatprep.subr.mxu0 0.0
  %105 = vmatpush1.msra.mxu0 0.0
  %106 = vmatprep.subr.mxu0 0.0
  %107 = vmatpush1.msra.mxu0 0.0
  %108 = vmatprep.subr.mxu0 0.0
  %109 = vmatpush1.msra.mxu0 0.0
  %110 = vmatprep.mubr.f32.mxu0 0.0
  %111 = vmatmul.mubr.f32.gmra.mrb[0].mxu0 %v41
  %v112 = vpop.f32.mrb[0].mxu0
  %v113 = vadd.f32 %v37, %v112
  %v114 = vpop.f32.mrb[0].mxu0
  %115 = vmatprep.mubr.f32.mxu0 0.0
  %116 = vmatmul.mubr.f32.gmra.mrb[0].mxu0 %v44
  %v117 = vpop.f32.mrb[0].mxu0
  %v118 = vadd.f32 %v37, %v117
  %v119 = vpop.f32.mrb[0].mxu0
  %120 = vdwg.mxu0
  %v121 = vmul.f32 %v113, 0.5
  %v122 = vmul.f32 %v118, 0.5
  %v123 = vmul.f32 %v113, 0.044715
  %v124 = vmul.f32 %v118, 0.044715
  %v125 = vmul.f32 %v123, %v113
  %v126 = vmul.f32 %v124, %v118
  %v127 = vmul.f32 %v125, %v113
  %v128 = vmul.f32 %v126, %v118
  %v129 = vadd.f32 %v113, %v127
  %v130 = vadd.f32 %v118, %v128
  %v131 = vmul.f32 %v129, 0.7978846
  %v132 = vmul.f32 %v130, 0.7978846
  %v133 = vtanh.pop %v131
  %v134 = vtanh.pop %v132
  %v135 = vadd.f32 %v133, 1.0
  %v136 = vadd.f32 %v134, 1.0
  %v137 = vmul.f32 %v121, %v135
  %v138 = vmul.f32 %v122, %v136
  %v139 = vld [vmem:[%s3] sm:$0xff]
  %v140 = vld [vmem:[%s3 + $0x8] sm:$0xff]
  %v141 = vld [vmem:[%s3 + $0x10] sm:$0xff]
  %v142 = vld [vmem:[%s3 + $0x18] sm:$0xff]
  %v143 = vld [vmem:[%s3 + $0x20] sm:$0xff]
  %v144 = vld [vmem:[%s3 + $0x28] sm:$0xff]
  %v145 = vld [vmem:[%s3 + $0x30] sm:$0xff]
  %v146 = vld [vmem:[%s3 + $0x38] sm:$0xff]
  %v147 = vld [vmem:[%s4] sm:$0x1]
  %v149 = vlaneseq
  %v150 = vshrl.u32 %v149, 7
  %v151 = vsub.s32 0, %v150
  %v152 = vrot.slane %v147, %v151
  %vm154 = vcmask 523264
  %v156 = vsel %vm154, %v137, 0
  %v159 = vsel %vm154, %v138, 0
  %161 = vmatprep.subr.mxu0 0.0
  %162 = vmatpush1.msra.mxu0 %v139
  %163 = vmatprep.subr.mxu0 0.0
  %164 = vmatpush1.msra.mxu0 %v140
  %165 = vmatprep.subr.mxu0 0.0
  %166 = vmatpush1.msra.mxu0 %v141
  %167 = vmatprep.subr.mxu0 0.0
  %168 = vmatpush1.msra.mxu0 %v142
  %169 = vmatprep.subr.mxu0 0.0
  %170 = vmatpush1.msra.mxu0 %v143
  %171 = vmatprep.subr.mxu0 0.0
  %172 = vmatpush1.msra.mxu0 %v144
  %173 = vmatprep.subr.mxu0 0.0
  %174 = vmatpush1.msra.mxu0 %v145
  %175 = vmatprep.subr.mxu0 0.0
  %176 = vmatpush1.msra.mxu0 %v146
  %177 = vmatprep.subr.mxu0 0.0
  %178 = vmatpush1.msra.mxu0 0.0
  %179 = vmatprep.subr.mxu0 0.0
  %180 = vmatpush1.msra.mxu0 0.0
  %181 = vmatprep.subr.mxu0 0.0
  %182 = vmatpush1.msra.mxu0 0.0
  %183 = vmatprep.subr.mxu0 0.0
  %184 = vmatpush1.msra.mxu0 0.0
  %185 = vmatprep.subr.mxu0 0.0
  %186 = vmatpush1.msra.mxu0 0.0
  %187 = vmatprep.subr.mxu0 0.0
  %188 = vmatpush1.msra.mxu0 0.0
  %189 = vmatprep.subr.mxu0 0.0
  %190 = vmatpush1.msra.mxu0 0.0
  %191 = vmatprep.subr.mxu0 0.0
  %192 = vmatpush1.msra.mxu0 0.0
  %193 = vmatprep.subr.mxu0 0.0
  %194 = vmatpush1.msra.mxu0 0.0
  %195 = vmatprep.subr.mxu0 0.0
  %196 = vmatpush1.msra.mxu0 0.0
  %197 = vmatprep.subr.mxu0 0.0
  %198 = vmatpush1.msra.mxu0 0.0
  %199 = vmatprep.subr.mxu0 0.0
  %200 = vmatpush1.msra.mxu0 0.0
  %201 = vmatprep.subr.mxu0 0.0
  %202 = vmatpush1.msra.mxu0 0.0
  %203 = vmatprep.subr.mxu0 0.0
  %204 = vmatpush1.msra.mxu0 0.0
  %205 = vmatprep.subr.mxu0 0.0
  %206 = vmatpush1.msra.mxu0 0.0
  %207 = vmatprep.subr.mxu0 0.0
  %208 = vmatpush1.msra.mxu0 0.0
  %209 = vmatprep.subr.mxu0 0.0
  %210 = vmatpush1.msra.mxu0 0.0
  %211 = vmatprep.subr.mxu0 0.0
  %212 = vmatpush1.msra.mxu0 0.0
  %213 = vmatprep.subr.mxu0 0.0
  %214 = vmatpush1.msra.mxu0 0.0
  %215 = vmatprep.subr.mxu0 0.0
  %216 = vmatpush1.msra.mxu0 0.0
  %217 = vmatprep.subr.mxu0 0.0
  %218 = vmatpush1.msra.mxu0 0.0
  %219 = vmatprep.subr.mxu0 0.0
  %220 = vmatpush1.msra.mxu0 0.0
  %221 = vmatprep.subr.mxu0 0.0
  %222 = vmatpush1.msra.mxu0 0.0
  %223 = vmatprep.subr.mxu0 0.0
  %224 = vmatpush1.msra.mxu0 0.0
  %225 = vmatprep.mubr.f32.mxu0 0.0
  %226 = vmatmul.mubr.f32.gmra.mrb[0].mxu0 %v156
  %v227 = vpop.f32.mrb[0].mxu0
  %v228 = vadd.f32 %v152, %v227
  %v229 = vpop.f32.mrb[0].mxu0
  %230 = vmatprep.mubr.f32.mxu0 0.0
  %231 = vmatmul.mubr.f32.gmra.mrb[0].mxu0 %v159
  %v232 = vpop.f32.mrb[0].mxu0
  %v233 = vadd.f32 %v152, %v232
  %v234 = vpop.f32.mrb[0].mxu0
  %235 = vdwg.mxu0
  %v236 = vadd.f32 %v26, %v228
  %v237 = vadd.f32 %v27, %v233
  %v238 = vsel %vm39, %v236, 0.0
  %239 = vadd.xlane.f32.xlu0 %v238
  %v240 = vpop.xlane.xlu0 %239
  %v241 = vsel %vm39, %v237, 0.0
  %242 = vadd.xlane.f32.xlu0 %v241
  %v243 = vpop.xlane.xlu0 %242
  %v244 = vrcp.pop 32.0
  %v245 = vmul.f32 %v240, %v244
  %v246 = vmul.f32 %v243, %v244
  %v247 = vsub.f32 %v236, %v245
  %v248 = vsub.f32 %v237, %v246
  %v249 = vmul.f32 %v247, %v247
  %v250 = vmul.f32 %v248, %v248
  %v251 = vsel %vm39, %v249, 0.0
  %252 = vadd.xlane.f32.xlu0 %v251
  %v253 = vpop.xlane.xlu0 %252
  %v254 = vsel %vm39, %v250, 0.0
  %255 = vadd.xlane.f32.xlu0 %v254
  %v256 = vpop.xlane.xlu0 %255
  %v257 = vmul.f32 %v253, %v244
  %v258 = vmul.f32 %v256, %v244
  %v259 = vadd.f32 %v257, 1e-05
  %v260 = vadd.f32 %v258, 1e-05
  %v261 = vrsqrt.pop %v259
  %v262 = vrsqrt.pop %v260
  %v263 = vmul.f32 %v247, %v261
  %v264 = vmul.f32 %v248, %v262
  %v265 = vld [vmem:[%s5] sm:$0x1]
  %v267 = vlaneseq
  %v268 = vshrl.u32 %v267, 7
  %v269 = vsub.s32 0, %v268
  %v270 = vrot.slane %v265, %v269
  %v272 = vmul.f32 %v263, %v270
  %v273 = vmul.f32 %v264, %v270
  %v274 = vld [vmem:[%s6] sm:$0x1]
  %v276 = vlaneseq
  %v277 = vshrl.u32 %v276, 7
  %v278 = vsub.s32 0, %v277
  %v279 = vrot.slane %v274, %v278
  %v281 = vadd.f32 %v272, %v279
  %v282 = vadd.f32 %v273, %v279
  %283 = vst.msk [vmem:[%s7] sm:$0xff] %vm39, %v281
  %284 = vst.msk [vmem:[%s7 + $0x8] sm:$0xff] %vm39, %v282
  // Predicated region
  $region30: #{bert_forward_pallas.8} parent=0 // pred_check
    _
  $region31: #{bert_forward_pallas.8} parent=0 // pred_check_branch
    %286 = sbr.rel (0) target = $region33
  $region32: #{bert_forward_pallas.8} parent=0 // pred_region
    _
  $region33: #{bert_forward_pallas.8} parent=0 // pred_fallthru
    _
  // Predicated region
  $region34: #{bert_forward_pallas.8} parent=0 // pred_check
    _
  $region35: #{bert_forward_pallas.8} parent=0 // pred_check_branch
    %288 = sbr.rel (0) target = $region37
  $region36: #{bert_forward_pallas.8} parent=0 // pred_region
    _
  $region37: #{bert_forward_pallas.8} parent=0 // pred_fallthru
    _

// kernel: bert_forward_pallas.7
$region0: #{bert_forward_pallas.7}
  #allocation0 [shape = 'u32[]', space=smem, size = 0x4, offset = 0x4, fixed_abs, tag = 'smem constant byte address 0x4 - core index']
  #allocation1 [shape = 'u32[144,128]{1,0:T(1,128)}', space=vmem, size = 0x12000, scoped, tag = 'internal scratch']
  %s0 = inlined_call_operand.vmem [shape: f32[2,8,32], index: 0, kind: input, shape index: {}]
  %s1 = inlined_call_operand.vmem [shape: f32[2,1,8], index: 1, kind: input, shape index: {}]
  %s2 = inlined_call_operand.vmem [shape: f32[32,96], index: 2, kind: input, shape index: {}]
  %s3 = inlined_call_operand.vmem [shape: f32[1,96], index: 3, kind: input, shape index: {}]
  %s4 = inlined_call_operand.vmem [shape: f32[32,32], index: 4, kind: input, shape index: {}]
  %s5 = inlined_call_operand.vmem [shape: f32[1,32], index: 5, kind: input, shape index: {}]
  %s6 = inlined_call_operand.vmem [shape: f32[1,32], index: 6, kind: input, shape index: {}]
  %s7 = inlined_call_operand.vmem [shape: f32[1,32], index: 7, kind: input, shape index: {}]
  %s8 = inlined_call_operand.vmem [shape: f32[2,8,32], index: 8, kind: output, shape index: {}]
  %s9 = sld [smem:[#allocation0]]
  $region65: #{bert_forward_pallas.7} parent=0
    _
  %s11 = ssub.s32 1, %s9
  %s12 = scalar_select 0, %s11, %s9
  loop: start=0, step=1, limit=4
  $region2: #{bert_forward_pallas.7} parent=0 // loop_pre_header
    _
  $region3: #{bert_forward_pallas.7} parent=0 // loop_header
    %s14 = sphi 0, %s18
    %p15 = scmp.ge.s32.totalorder %s14, 4
    %s24 = sphi 0, %s26
    %s27 = sphi 0, %s24
    %s28 = sphi 0, %s27
    %s44 = sphi 0, %s28
    %s50 = sphi 0, %s52
    %s53 = sphi 0, %s50
    %s54 = sphi 0, %s53
    %s70 = sphi 0, %s54
    %s74 = sphi 0, %s74
    %s76 = sphi 0, %s74
    %s77 = sphi 0, %s76
    %s91 = sphi 0, %s77
    %s95 = sphi 0, %s95
    %s97 = sphi 0, %s95
    %s98 = sphi 0, %s97
    %s112 = sphi 0, %s98
    %s116 = sphi 0, %s116
    %s118 = sphi 0, %s116
    %s119 = sphi 0, %s118
    %s133 = sphi 0, %s119
    %s137 = sphi 0, %s137
    %s139 = sphi 0, %s137
    %s140 = sphi 0, %s139
    %s154 = sphi 0, %s140
    %s158 = sphi 0, %s158
    %s160 = sphi 0, %s158
    %s161 = sphi 0, %s160
    %s175 = sphi 0, %s161
    %s179 = sphi 0, %s179
    %s181 = sphi 0, %s179
    %s182 = sphi 0, %s181
    %s196 = sphi 0, %s182
    %s202 = sphi 0, %s204
    %s205 = sphi 0, %s202
    %s206 = sphi 0, %s205
    %s222 = sphi 0, %s206
  $region4: #{bert_forward_pallas.7} parent=0 // loop_header_branch
    %17 = sbr.rel (%p15) target = $region8
  $region5: #{bert_forward_pallas.7} parent=0 // loop_body
    %s19 = ssub.s32 %s14, 1
    %s20 = ssub.s32 %s14, 2
    %s21 = sadd.s32 %s14, 1
    %s22 = ssub.s32 %s14, %s21
    %p23 = scmp.eq.s32.totalorder %s22, 0
    %s25 = sadd.s32 %s24, 1
    %s26 = scalar_select %p23, %s24, %s25
    %p29 = pneg %p23
    %p30 = scmp.eq.s32.totalorder %s14, 1
    %p31 = por %p29, %p30
    %p32 = scmp.ne.s32.totalorder %s24, %s27
    %p33 = scmp.eq.s32.totalorder %s14, 0
    %p34 = por %p32, %p33
    %p35 = scmp.ne.s32.totalorder %s24, %s27
    %p36 = scmp.eq.s32.totalorder %s19, 1
    %p37 = por %p35, %p36
    %p38 = scmp.ne.s32.totalorder %s27, %s28
    %p39 = scmp.eq.s32.totalorder %s19, 0
    %p40 = por %p38, %p39
    %p41 = scmp.ne.s32.totalorder %s27, %s28
    %p42 = scmp.eq.s32.totalorder %s20, 1
    %p43 = por %p41, %p42
    %p45 = scmp.ne.s32.totalorder %s28, %s44
    %p46 = scmp.eq.s32.totalorder %s20, 0
    %p47 = por %p45, %p46
    %s48 = ssub.s32 %s14, %s21
    %p49 = scmp.eq.s32.totalorder %s48, 0
    %s51 = sadd.s32 %s50, 1
    %s52 = scalar_select %p49, %s50, %s51
    %p55 = pneg %p49
    %p56 = scmp.eq.s32.totalorder %s14, 1
    %p57 = por %p55, %p56
    %p58 = scmp.ne.s32.totalorder %s50, %s53
    %p59 = scmp.eq.s32.totalorder %s14, 0
    %p60 = por %p58, %p59
    %p61 = scmp.ne.s32.totalorder %s50, %s53
    %p62 = scmp.eq.s32.totalorder %s19, 1
    %p63 = por %p61, %p62
    %p64 = scmp.ne.s32.totalorder %s53, %s54
    %p65 = scmp.eq.s32.totalorder %s19, 0
    %p66 = por %p64, %p65
    %p67 = scmp.ne.s32.totalorder %s53, %s54
    %p68 = scmp.eq.s32.totalorder %s20, 1
    %p69 = por %p67, %p68
    %p71 = scmp.ne.s32.totalorder %s54, %s70
    %p72 = scmp.eq.s32.totalorder %s20, 0
    %p73 = por %p71, %p72
    %s75 = sadd.s32 %s74, 1
    %p78 = scmp.eq.s32.totalorder %s14, 1
    %p79 = scmp.ne.s32.totalorder %s74, %s76
    %p80 = scmp.eq.s32.totalorder %s14, 0
    %p81 = por %p79, %p80
    %p82 = scmp.ne.s32.totalorder %s74, %s76
    %p83 = scmp.eq.s32.totalorder %s19, 1
    %p84 = por %p82, %p83
    %p85 = scmp.ne.s32.totalorder %s76, %s77
    %p86 = scmp.eq.s32.totalorder %s19, 0
    %p87 = por %p85, %p86
    %p88 = scmp.ne.s32.totalorder %s76, %s77
    %p89 = scmp.eq.s32.totalorder %s20, 1
    %p90 = por %p88, %p89
    %p92 = scmp.ne.s32.totalorder %s77, %s91
    %p93 = scmp.eq.s32.totalorder %s20, 0
    %p94 = por %p92, %p93
    %s96 = sadd.s32 %s95, 1
    %p99 = scmp.eq.s32.totalorder %s14, 1
    %p100 = scmp.ne.s32.totalorder %s95, %s97
    %p101 = scmp.eq.s32.totalorder %s14, 0
    %p102 = por %p100, %p101
    %p103 = scmp.ne.s32.totalorder %s95, %s97
    %p104 = scmp.eq.s32.totalorder %s19, 1
    %p105 = por %p103, %p104
    %p106 = scmp.ne.s32.totalorder %s97, %s98
    %p107 = scmp.eq.s32.totalorder %s19, 0
    %p108 = por %p106, %p107
    %p109 = scmp.ne.s32.totalorder %s97, %s98
    %p110 = scmp.eq.s32.totalorder %s20, 1
    %p111 = por %p109, %p110
    %p113 = scmp.ne.s32.totalorder %s98, %s112
    %p114 = scmp.eq.s32.totalorder %s20, 0
    %p115 = por %p113, %p114
    %s117 = sadd.s32 %s116, 1
    %p120 = scmp.eq.s32.totalorder %s14, 1
    %p121 = scmp.ne.s32.totalorder %s116, %s118
    %p122 = scmp.eq.s32.totalorder %s14, 0
    %p123 = por %p121, %p122
    %p124 = scmp.ne.s32.totalorder %s116, %s118
    %p125 = scmp.eq.s32.totalorder %s19, 1
    %p126 = por %p124, %p125
    %p127 = scmp.ne.s32.totalorder %s118, %s119
    %p128 = scmp.eq.s32.totalorder %s19, 0
    %p129 = por %p127, %p128
    %p130 = scmp.ne.s32.totalorder %s118, %s119
    %p131 = scmp.eq.s32.totalorder %s20, 1
    %p132 = por %p130, %p131
    %p134 = scmp.ne.s32.totalorder %s119, %s133
    %p135 = scmp.eq.s32.totalorder %s20, 0
    %p136 = por %p134, %p135
    %s138 = sadd.s32 %s137, 1
    %p141 = scmp.eq.s32.totalorder %s14, 1
    %p142 = scmp.ne.s32.totalorder %s137, %s139
    %p143 = scmp.eq.s32.totalorder %s14, 0
    %p144 = por %p142, %p143
    %p145 = scmp.ne.s32.totalorder %s137, %s139
    %p146 = scmp.eq.s32.totalorder %s19, 1
    %p147 = por %p145, %p146
    %p148 = scmp.ne.s32.totalorder %s139, %s140
    %p149 = scmp.eq.s32.totalorder %s19, 0
    %p150 = por %p148, %p149
    %p151 = scmp.ne.s32.totalorder %s139, %s140
    %p152 = scmp.eq.s32.totalorder %s20, 1
    %p153 = por %p151, %p152
    %p155 = scmp.ne.s32.totalorder %s140, %s154
    %p156 = scmp.eq.s32.totalorder %s20, 0
    %p157 = por %p155, %p156
    %s159 = sadd.s32 %s158, 1
    %p162 = scmp.eq.s32.totalorder %s14, 1
    %p163 = scmp.ne.s32.totalorder %s158, %s160
    %p164 = scmp.eq.s32.totalorder %s14, 0
    %p165 = por %p163, %p164
    %p166 = scmp.ne.s32.totalorder %s158, %s160
    %p167 = scmp.eq.s32.totalorder %s19, 1
    %p168 = por %p166, %p167
    %p169 = scmp.ne.s32.totalorder %s160, %s161
    %p170 = scmp.eq.s32.totalorder %s19, 0
    %p171 = por %p169, %p170
    %p172 = scmp.ne.s32.totalorder %s160, %s161
    %p173 = scmp.eq.s32.totalorder %s20, 1
    %p174 = por %p172, %p173
    %p176 = scmp.ne.s32.totalorder %s161, %s175
    %p177 = scmp.eq.s32.totalorder %s20, 0
    %p178 = por %p176, %p177
    %s180 = sadd.s32 %s179, 1
    %p183 = scmp.eq.s32.totalorder %s14, 1
    %p184 = scmp.ne.s32.totalorder %s179, %s181
    %p185 = scmp.eq.s32.totalorder %s14, 0
    %p186 = por %p184, %p185
    %p187 = scmp.ne.s32.totalorder %s179, %s181
    %p188 = scmp.eq.s32.totalorder %s19, 1
    %p189 = por %p187, %p188
    %p190 = scmp.ne.s32.totalorder %s181, %s182
    %p191 = scmp.eq.s32.totalorder %s19, 0
    %p192 = por %p190, %p191
    %p193 = scmp.ne.s32.totalorder %s181, %s182
    %p194 = scmp.eq.s32.totalorder %s20, 1
    %p195 = por %p193, %p194
    %p197 = scmp.ne.s32.totalorder %s182, %s196
    %p198 = scmp.eq.s32.totalorder %s20, 0
    %p199 = por %p197, %p198
    %s200 = ssub.s32 %s14, %s21
    %p201 = scmp.eq.s32.totalorder %s200, 0
    %s203 = sadd.s32 %s202, 1
    %s204 = scalar_select %p201, %s202, %s203
    %p207 = pneg %p201
    %p208 = scmp.eq.s32.totalorder %s14, 1
    %p209 = por %p207, %p208
    %p210 = scmp.ne.s32.totalorder %s202, %s205
    %p211 = scmp.eq.s32.totalorder %s14, 0
    %p212 = por %p210, %p211
    %p213 = scmp.ne.s32.totalorder %s202, %s205
    %p214 = scmp.eq.s32.totalorder %s19, 1
    %p215 = por %p213, %p214
    %p216 = scmp.ne.s32.totalorder %s205, %s206
    %p217 = scmp.eq.s32.totalorder %s19, 0
    %p218 = por %p216, %p217
    %p219 = scmp.ne.s32.totalorder %s205, %s206
    %p220 = scmp.eq.s32.totalorder %s20, 1
    %p221 = por %p219, %p220
    %p223 = scmp.ne.s32.totalorder %s206, %s222
    %p224 = scmp.eq.s32.totalorder %s20, 0
    %p225 = por %p223, %p224
    %p226 = scmp.le.s32.totalorder 1, %s14
    %p227 = scmp.lt.s32.totalorder %s14, 3
    %p228 = pnand %p226, %p227
    %p229 = pneg %p228
    // Predicated region
    $region9: #{bert_forward_pallas.7} parent=5 // pred_check
      _
    $region10: #{bert_forward_pallas.7} parent=5 // pred_check_branch
      %231 = sbr.rel (%p228) target = $region12
    $region11: #{bert_forward_pallas.7} parent=5 // pred_region
      %s232 = ssub.s32 %s14, 1
      // Predicated region
      $region13: #{bert_forward_pallas.7} parent=11 // pred_check
        %p233 = pneg %p87
      $region14: #{bert_forward_pallas.7} parent=11 // pred_check_branch
        %235 = sbr.rel (%p233) target = $region16
      $region15: #{bert_forward_pallas.7} parent=11 // pred_region
        _
      $region16: #{bert_forward_pallas.7} parent=11 // pred_fallthru
        _
      // Predicated region
      $region17: #{bert_forward_pallas.7} parent=11 // pred_check
        %p236 = pneg %p108
      $region18: #{bert_forward_pallas.7} parent=11 // pred_check_branch
        %238 = sbr.rel (%p236) target = $region20
      $region19: #{bert_forward_pallas.7} parent=11 // pred_region
        _
      $region20: #{bert_forward_pallas.7} parent=11 // pred_fallthru
        _
      // Predicated region
      $region21: #{bert_forward_pallas.7} parent=11 // pred_check
        %p239 = pneg %p129
      $region22: #{bert_forward_pallas.7} parent=11 // pred_check_branch
        %241 = sbr.rel (%p239) target = $region24
      $region23: #{bert_forward_pallas.7} parent=11 // pred_region
        _
      $region24: #{bert_forward_pallas.7} parent=11 // pred_fallthru
        _
      // Predicated region
      $region25: #{bert_forward_pallas.7} parent=11 // pred_check
        %p242 = pneg %p150
      $region26: #{bert_forward_pallas.7} parent=11 // pred_check_branch
        %244 = sbr.rel (%p242) target = $region28
      $region27: #{bert_forward_pallas.7} parent=11 // pred_region
        _
      $region28: #{bert_forward_pallas.7} parent=11 // pred_fallthru
        _
      // Predicated region
      $region29: #{bert_forward_pallas.7} parent=11 // pred_check
        %p245 = pneg %p171
      $region30: #{bert_forward_pallas.7} parent=11 // pred_check_branch
        %247 = sbr.rel (%p245) target = $region32
      $region31: #{bert_forward_pallas.7} parent=11 // pred_region
        _
      $region32: #{bert_forward_pallas.7} parent=11 // pred_fallthru
        _
      // Predicated region
      $region33: #{bert_forward_pallas.7} parent=11 // pred_check
        %p248 = pneg %p192
      $region34: #{bert_forward_pallas.7} parent=11 // pred_check_branch
        %250 = sbr.rel (%p248) target = $region36
      $region35: #{bert_forward_pallas.7} parent=11 // pred_region
        _
      $region36: #{bert_forward_pallas.7} parent=11 // pred_fallthru
        _
    $region12: #{bert_forward_pallas.7} parent=5 // pred_fallthru
      _
    %p251 = scmp.lt.s32.totalorder %s14, 2
    // Predicated region
    $region37: #{bert_forward_pallas.7} parent=5 // pred_check
      %p252 = pneg %p251
    $region38: #{bert_forward_pallas.7} parent=5 // pred_check_branch
      %254 = sbr.rel (%p252) target = $region40
    $region39: #{bert_forward_pallas.7} parent=5 // pred_region
      // Predicated region
      $region41: #{bert_forward_pallas.7} parent=39 // pred_check
        %p255 = pneg %p34
      $region42: #{bert_forward_pallas.7} parent=39 // pred_check_branch
        %257 = sbr.rel (%p255) target = $region44
      $region43: #{bert_forward_pallas.7} parent=39 // pred_region
        %p258 = scmp.lt.s32.totalorder %s14, 1
        %s259 = scalar_select %p258, %s14, 1
        %s260 = smul.addr %s259, 8
        %s261 = scalar_lea.vmem %s0, %s260
      $region44: #{bert_forward_pallas.7} parent=39 // pred_fallthru
        _
      // Predicated region
      $region45: #{bert_forward_pallas.7} parent=39 // pred_check
        %p262 = pneg %p60
      $region46: #{bert_forward_pallas.7} parent=39 // pred_check_branch
        %264 = sbr.rel (%p262) target = $region48
      $region47: #{bert_forward_pallas.7} parent=39 // pred_region
        %p265 = scmp.lt.s32.totalorder %s14, 1
        %s266 = scalar_select %p265, %s14, 1
        %s267 = scalar_lea.vmem %s1, %s266
      $region48: #{bert_forward_pallas.7} parent=39 // pred_fallthru
        _
    $region40: #{bert_forward_pallas.7} parent=5 // pred_fallthru
      _
    %p268 = scmp.le.s32.totalorder 1, %s14
    %p269 = scmp.lt.s32.totalorder %s14, 3
    %p270 = pnand %p268, %p269
    %p271 = pneg %p270
    // Predicated region
    $region49: #{bert_forward_pallas.7} parent=5 // pred_check
      _
    $region50: #{bert_forward_pallas.7} parent=5 // pred_check_branch
      %273 = sbr.rel (%p270) target = $region52
    $region51: #{bert_forward_pallas.7} parent=5 // pred_region
      %s274 = ssub.s32 %s14, 1
      %p275 = scmp.lt.s32.totalorder %s19, 1
      %s276 = scalar_select %p275, %s19, 1
      %s277 = smul.addr %s276, 8
      %s278 = scalar_lea.vmem %s0, %s277
      %p279 = pneg %p40
      %p280 = pneg %p37
      %p281 = scmp.lt.s32.totalorder %s19, 1
      %s282 = scalar_select %p281, %s19, 1
      %s283 = scalar_lea.vmem %s1, %s282
      %p284 = pneg %p66
      %p285 = pneg %p63
      %p286 = pneg %p87
      %p287 = pneg %p84
      %p288 = pneg %p108
      %p289 = pneg %p105
      %p290 = pneg %p129
      %p291 = pneg %p126
      %p292 = pneg %p150
      %p293 = pneg %p147
      %p294 = pneg %p171
      %p295 = pneg %p168
      %p296 = pneg %p192
      %p297 = pneg %p189
      %p298 = pneg %p218
      %p299 = pneg %p215
      %p300 = scmp.lt.s32.totalorder %s19, 1
      %s301 = scalar_select %p300, %s19, 1
      %s302 = smul.addr %s301, 8
      %s303 = scalar_lea.vmem %s8, %s302
      %p304 = scmp.lt.s32.totalorder %s19, 1
      %s305 = scalar_select %p304, %s19, 1
      %s306 = smul.addr %s305, 8
      %s307 = scalar_lea.vmem %s0, %s306
      %p308 = scmp.lt.s32.totalorder %s19, 1
      %s309 = scalar_select %p308, %s19, 1
      %s310 = scalar_lea.vmem %s1, %s309
      %p311 = scmp.lt.s32.totalorder %s19, 1
      %s312 = scalar_select %p311, %s19, 1
      %s313 = smul.addr %s312, 8
      %s314 = scalar_lea.vmem %s8, %s313
      %v315 = vld [vmem:[%s307] sm:$0xff]
      %v316 = vld [vmem:[%s2] sm:$0xff]
      %v317 = vld [vmem:[%s2 + $0x8] sm:$0xff]
      %v318 = vld [vmem:[%s2 + $0x10] sm:$0xff]
      %v319 = vld [vmem:[%s2 + $0x18] sm:$0xff]
      %v320 = vld [vmem:[%s3] sm:$0x1]
      %v322 = vlaneseq
      %v323 = vshrl.u32 %v322, 7
      %v324 = vsub.s32 0, %v323
      %v325 = vrot.slane %v320, %v324
      %vm327 = vcmask 261120
      %v329 = vsel %vm327, %v315, 0
      %331 = vmatprep.subr.mxu0 0.0
      %332 = vmatpush1.msra.mxu0 %v316
      %333 = vmatprep.subr.mxu0 0.0
      %334 = vmatpush1.msra.mxu0 %v317
      %335 = vmatprep.subr.mxu0 0.0
      %336 = vmatpush1.msra.mxu0 %v318
      %337 = vmatprep.subr.mxu0 0.0
      %338 = vmatpush1.msra.mxu0 %v319
      %339 = vmatprep.subr.mxu0 0.0
      %340 = vmatpush1.msra.mxu0 0.0
      %341 = vmatprep.subr.mxu0 0.0
      %342 = vmatpush1.msra.mxu0 0.0
      %343 = vmatprep.subr.mxu0 0.0
      %344 = vmatpush1.msra.mxu0 0.0
      %345 = vmatprep.subr.mxu0 0.0
      %346 = vmatpush1.msra.mxu0 0.0
      %347 = vmatprep.subr.mxu0 0.0
      %348 = vmatpush1.msra.mxu0 0.0
      %349 = vmatprep.subr.mxu0 0.0
      %350 = vmatpush1.msra.mxu0 0.0
      %351 = vmatprep.subr.mxu0 0.0
      %352 = vmatpush1.msra.mxu0 0.0
      %353 = vmatprep.subr.mxu0 0.0
      %354 = vmatpush1.msra.mxu0 0.0
      %355 = vmatprep.subr.mxu0 0.0
      %356 = vmatpush1.msra.mxu0 0.0
      %357 = vmatprep.subr.mxu0 0.0
      %358 = vmatpush1.msra.mxu0 0.0
      %359 = vmatprep.subr.mxu0 0.0
      %360 = vmatpush1.msra.mxu0 0.0
      %361 = vmatprep.subr.mxu0 0.0
      %362 = vmatpush1.msra.mxu0 0.0
      %363 = vmatprep.subr.mxu0 0.0
      %364 = vmatpush1.msra.mxu0 0.0
      %365 = vmatprep.subr.mxu0 0.0
      %366 = vmatpush1.msra.mxu0 0.0
      %367 = vmatprep.subr.mxu0 0.0
      %368 = vmatpush1.msra.mxu0 0.0
      %369 = vmatprep.subr.mxu0 0.0
      %370 = vmatpush1.msra.mxu0 0.0
      %371 = vmatprep.subr.mxu0 0.0
      %372 = vmatpush1.msra.mxu0 0.0
      %373 = vmatprep.subr.mxu0 0.0
      %374 = vmatpush1.msra.mxu0 0.0
      %375 = vmatprep.subr.mxu0 0.0
      %376 = vmatpush1.msra.mxu0 0.0
      %377 = vmatprep.subr.mxu0 0.0
      %378 = vmatpush1.msra.mxu0 0.0
      %379 = vmatprep.subr.mxu0 0.0
      %380 = vmatpush1.msra.mxu0 0.0
      %381 = vmatprep.subr.mxu0 0.0
      %382 = vmatpush1.msra.mxu0 0.0
      %383 = vmatprep.subr.mxu0 0.0
      %384 = vmatpush1.msra.mxu0 0.0
      %385 = vmatprep.subr.mxu0 0.0
      %386 = vmatpush1.msra.mxu0 0.0
      %387 = vmatprep.subr.mxu0 0.0
      %388 = vmatpush1.msra.mxu0 0.0
      %389 = vmatprep.subr.mxu0 0.0
      %390 = vmatpush1.msra.mxu0 0.0
      %391 = vmatprep.subr.mxu0 0.0
      %392 = vmatpush1.msra.mxu0 0.0
      %393 = vmatprep.subr.mxu0 0.0
      %394 = vmatpush1.msra.mxu0 0.0
      %395 = vmatprep.mubr.f32.mxu0 0.0
      %396 = vmatmul.mubr.f32.gmra.mrb[0].mxu0 %v329
      %v397 = vpop.f32.mrb[0].mxu0
      %v398 = vadd.f32 %v325, %v397
      %v399 = vpop.f32.mrb[0].mxu0
      %400 = vdwg.mxu0
      %v401 = vld [vmem:[%s310] sm:$0x1]
      %403 = vrot.lane.b32.xlu0 %v398, 96
      %v404 = vpop.permute.xlu0 %403
      %vm405 = vcmask 64512
      %v406 = vsel %vm405, %v398, 0
      %v408 = vsel %vm405, %v404, 0
      %410 = vmatprep.subr.mxu0 0.0
      %411 = vmatpush1.xpose.msra.mxu0 %v408
      %412 = vmatprep.subr.mxu0 0.0
      %413 = vmatpush1.xpose.msra.mxu0 0.0
      %414 = vmatprep.subr.mxu0 0.0
      %415 = vmatpush1.xpose.msra.mxu0 0.0
      %416 = vmatprep.subr.mxu0 0.0
      %417 = vmatpush1.xpose.msra.mxu0 0.0
      %418 = vmatprep.subr.mxu0 0.0
      %419 = vmatpush1.xpose.msra.mxu0 0.0
      %420 = vmatprep.subr.mxu0 0.0
      %421 = vmatpush1.xpose.msra.mxu0 0.0
      %422 = vmatprep.subr.mxu0 0.0
      %423 = vmatpush1.xpose.msra.mxu0 0.0
      %424 = vmatprep.subr.mxu0 0.0
      %425 = vmatpush1.xpose.msra.mxu0 0.0
      %426 = vmatprep.subr.mxu0 0.0
      %427 = vmatpush1.xpose.msra.mxu0 0.0
      %428 = vmatprep.subr.mxu0 0.0
      %429 = vmatpush1.xpose.msra.mxu0 0.0
      %430 = vmatprep.subr.mxu0 0.0
      %431 = vmatpush1.xpose.msra.mxu0 0.0
      %432 = vmatprep.subr.mxu0 0.0
      %433 = vmatpush1.xpose.msra.mxu0 0.0
      %434 = vmatprep.subr.mxu0 0.0
      %435 = vmatpush1.xpose.msra.mxu0 0.0
      %436 = vmatprep.subr.mxu0 0.0
      %437 = vmatpush1.xpose.msra.mxu0 0.0
      %438 = vmatprep.subr.mxu0 0.0
      %439 = vmatpush1.xpose.msra.mxu0 0.0
      %440 = vmatprep.subr.mxu0 0.0
      %441 = vmatpush1.xpose.msra.mxu0 0.0
      %442 = vmatprep.subr.mxu0 0.0
      %443 = vmatpush1.xpose.msra.mxu0 0.0
      %444 = vmatprep.subr.mxu0 0.0
      %445 = vmatpush1.xpose.msra.mxu0 0.0
      %446 = vmatprep.subr.mxu0 0.0
      %447 = vmatpush1.xpose.msra.mxu0 0.0
      %448 = vmatprep.subr.mxu0 0.0
      %449 = vmatpush1.xpose.msra.mxu0 0.0
      %450 = vmatprep.subr.mxu0 0.0
      %451 = vmatpush1.xpose.msra.mxu0 0.0
      %452 = vmatprep.subr.mxu0 0.0
      %453 = vmatpush1.xpose.msra.mxu0 0.0
      %454 = vmatprep.subr.mxu0 0.0
      %455 = vmatpush1.xpose.msra.mxu0 0.0
      %456 = vmatprep.subr.mxu0 0.0
      %457 = vmatpush1.xpose.msra.mxu0 0.0
      %458 = vmatprep.subr.mxu0 0.0
      %459 = vmatpush1.xpose.msra.mxu0 0.0
      %460 = vmatprep.subr.mxu0 0.0
      %461 = vmatpush1.xpose.msra.mxu0 0.0
      %462 = vmatprep.subr.mxu0 0.0
      %463 = vmatpush1.xpose.msra.mxu0 0.0
      %464 = vmatprep.subr.mxu0 0.0
      %465 = vmatpush1.xpose.msra.mxu0 0.0
      %466 = vmatprep.subr.mxu0 0.0
      %467 = vmatpush1.xpose.msra.mxu0 0.0
      %468 = vmatprep.subr.mxu0 0.0
      %469 = vmatpush1.xpose.msra.mxu0 0.0
      %470 = vmatprep.subr.mxu0 0.0
      %471 = vmatpush1.xpose.msra.mxu0 0.0
      %472 = vmatprep.subr.mxu0 0.0
      %473 = vmatpush1.xpose.msra.mxu0 0.0
      %474 = vmatprep.mubr.f32.mxu0 0.0
      %475 = vmatmul.mubr.f32.gmra.mrb[0].mxu0 %v406
      %v476 = vpop.f32.mrb[0].mxu0
      %v477 = vadd.f32 0.0, %v476
      %v478 = vpop.f32.mrb[0].mxu0
      %479 = vdwg.mxu0
      %v480 = vmul.f32 %v477, 0.35355338
      %vm481 = vcmp.ne.f32.partialorder %v401, 0.0
      %v482 = vsel %vm481, 1, 0
      %v483 = vlaneseq
      %v484 = vshrl.u32 %v483, 7
      %v485 = vsub.s32 0, %v484
      %v486 = vrot.slane %v482, %v485
      %vm487 = vcmp.eq.s32.totalorder %v486, 1
      %v488 = vsel %vm487, %v480, -3.4028235e+38
      %v489 = vsel %vm405, %v488, -inf
      %490 = vmax.xlane.f32.xlu0 %v489
      %v491 = vpop.xlane.xlu0 %490
      %v492 = vsub.f32 %v488, %v491
      %v493 = vmul.f32 %v492, 1.442695
      %v494 = vpow.pop %v493
      %v495 = vsel %vm405, %v494, 0.0
      %496 = vadd.xlane.f32.xlu0 %v495
      %v497 = vpop.xlane.xlu0 %496
      %v498 = vrcp.pop %v497
      %v499 = vmul.f32 %v494, %v498
      %500 = vrot.lane.b32.xlu0 %v398, 64
      %v501 = vpop.permute.xlu0 %500
      %v504 = vsel %vm405, %v499, 0
      %506 = vmatprep.subr.mxu0 0.0
      %507 = vmatpush1.msra.mxu0 %v501
      %508 = vmatprep.subr.mxu0 0.0
      %509 = vmatpush1.msra.mxu0 0.0
      %510 = vmatprep.subr.mxu0 0.0
      %511 = vmatpush1.msra.mxu0 0.0
      %512 = vmatprep.subr.mxu0 0.0
      %513 = vmatpush1.msra.mxu0 0.0
      %514 = vmatprep.subr.mxu0 0.0
      %515 = vmatpush1.msra.mxu0 0.0
      %516 = vmatprep.subr.mxu0 0.0
      %517 = vmatpush1.msra.mxu0 0.0
      %518 = vmatprep.subr.mxu0 0.0
      %519 = vmatpush1.msra.mxu0 0.0
      %520 = vmatprep.subr.mxu0 0.0
      %521 = vmatpush1.msra.mxu0 0.0
      %522 = vmatprep.subr.mxu0 0.0
      %523 = vmatpush1.msra.mxu0 0.0
      %524 = vmatprep.subr.mxu0 0.0
      %525 = vmatpush1.msra.mxu0 0.0
      %526 = vmatprep.subr.mxu0 0.0
      %527 = vmatpush1.msra.mxu0 0.0
      %528 = vmatprep.subr.mxu0 0.0
      %529 = vmatpush1.msra.mxu0 0.0
      %530 = vmatprep.subr.mxu0 0.0
      %531 = vmatpush1.msra.mxu0 0.0
      %532 = vmatprep.subr.mxu0 0.0
      %533 = vmatpush1.msra.mxu0 0.0
      %534 = vmatprep.subr.mxu0 0.0
      %535 = vmatpush1.msra.mxu0 0.0
      %536 = vmatprep.subr.mxu0 0.0
      %537 = vmatpush1.msra.mxu0 0.0
      %538 = vmatprep.subr.mxu0 0.0
      %539 = vmatpush1.msra.mxu0 0.0
      %540 = vmatprep.subr.mxu0 0.0
      %541 = vmatpush1.msra.mxu0 0.0
      %542 = vmatprep.subr.mxu0 0.0
      %543 = vmatpush1.msra.mxu0 0.0
      %544 = vmatprep.subr.mxu0 0.0
      %545 = vmatpush1.msra.mxu0 0.0
      %546 = vmatprep.subr.mxu0 0.0
      %547 = vmatpush1.msra.mxu0 0.0
      %548 = vmatprep.subr.mxu0 0.0
      %549 = vmatpush1.msra.mxu0 0.0
      %550 = vmatprep.subr.mxu0 0.0
      %551 = vmatpush1.msra.mxu0 0.0
      %552 = vmatprep.subr.mxu0 0.0
      %553 = vmatpush1.msra.mxu0 0.0
      %554 = vmatprep.subr.mxu0 0.0
      %555 = vmatpush1.msra.mxu0 0.0
      %556 = vmatprep.subr.mxu0 0.0
      %557 = vmatpush1.msra.mxu0 0.0
      %558 = vmatprep.subr.mxu0 0.0
      %559 = vmatpush1.msra.mxu0 0.0
      %560 = vmatprep.subr.mxu0 0.0
      %561 = vmatpush1.msra.mxu0 0.0
      %562 = vmatprep.subr.mxu0 0.0
      %563 = vmatpush1.msra.mxu0 0.0
      %564 = vmatprep.subr.mxu0 0.0
      %565 = vmatpush1.msra.mxu0 0.0
      %566 = vmatprep.subr.mxu0 0.0
      %567 = vmatpush1.msra.mxu0 0.0
      %568 = vmatprep.subr.mxu0 0.0
      %569 = vmatpush1.msra.mxu0 0.0
      %570 = vmatprep.mubr.f32.mxu0 0.0
      %571 = vmatmul.mubr.f32.gmra.mrb[0].mxu0 %v504
      %v572 = vpop.f32.mrb[0].mxu0
      %v573 = vadd.f32 0.0, %v572
      %v574 = vpop.f32.mrb[0].mxu0
      %575 = vdwg.mxu0
      %576 = vrot.lane.b32.xlu0 %v398, 120
      %v577 = vpop.permute.xlu0 %576
      %578 = vrot.lane.b32.xlu0 %v398, 88
      %v579 = vpop.permute.xlu0 %578
      %v580 = vsel %vm405, %v577, 0
      %v582 = vsel %vm405, %v579, 0
      %584 = vmatprep.subr.mxu0 0.0
      %585 = vmatpush1.xpose.msra.mxu0 %v582
      %586 = vmatprep.subr.mxu0 0.0
      %587 = vmatpush1.xpose.msra.mxu0 0.0
      %588 = vmatprep.subr.mxu0 0.0
      %589 = vmatpush1.xpose.msra.mxu0 0.0
      %590 = vmatprep.subr.mxu0 0.0
      %591 = vmatpush1.xpose.msra.mxu0 0.0
      %592 = vmatprep.subr.mxu0 0.0
      %593 = vmatpush1.xpose.msra.mxu0 0.0
      %594 = vmatprep.subr.mxu0 0.0
      %595 = vmatpush1.xpose.msra.mxu0 0.0
      %596 = vmatprep.subr.mxu0 0.0
      %597 = vmatpush1.xpose.msra.mxu0 0.0
      %598 = vmatprep.subr.mxu0 0.0
      %599 = vmatpush1.xpose.msra.mxu0 0.0
      %600 = vmatprep.subr.mxu0 0.0
      %601 = vmatpush1.xpose.msra.mxu0 0.0
      %602 = vmatprep.subr.mxu0 0.0
      %603 = vmatpush1.xpose.msra.mxu0 0.0
      %604 = vmatprep.subr.mxu0 0.0
      %605 = vmatpush1.xpose.msra.mxu0 0.0
      %606 = vmatprep.subr.mxu0 0.0
      %607 = vmatpush1.xpose.msra.mxu0 0.0
      %608 = vmatprep.subr.mxu0 0.0
      %609 = vmatpush1.xpose.msra.mxu0 0.0
      %610 = vmatprep.subr.mxu0 0.0
      %611 = vmatpush1.xpose.msra.mxu0 0.0
      %612 = vmatprep.subr.mxu0 0.0
      %613 = vmatpush1.xpose.msra.mxu0 0.0
      %614 = vmatprep.subr.mxu0 0.0
      %615 = vmatpush1.xpose.msra.mxu0 0.0
      %616 = vmatprep.subr.mxu0 0.0
      %617 = vmatpush1.xpose.msra.mxu0 0.0
      %618 = vmatprep.subr.mxu0 0.0
      %619 = vmatpush1.xpose.msra.mxu0 0.0
      %620 = vmatprep.subr.mxu0 0.0
      %621 = vmatpush1.xpose.msra.mxu0 0.0
      %622 = vmatprep.subr.mxu0 0.0
      %623 = vmatpush1.xpose.msra.mxu0 0.0
      %624 = vmatprep.subr.mxu0 0.0
      %625 = vmatpush1.xpose.msra.mxu0 0.0
      %626 = vmatprep.subr.mxu0 0.0
      %627 = vmatpush1.xpose.msra.mxu0 0.0
      %628 = vmatprep.subr.mxu0 0.0
      %629 = vmatpush1.xpose.msra.mxu0 0.0
      %630 = vmatprep.subr.mxu0 0.0
      %631 = vmatpush1.xpose.msra.mxu0 0.0
      %632 = vmatprep.subr.mxu0 0.0
      %633 = vmatpush1.xpose.msra.mxu0 0.0
      %634 = vmatprep.subr.mxu0 0.0
      %635 = vmatpush1.xpose.msra.mxu0 0.0
      %636 = vmatprep.subr.mxu0 0.0
      %637 = vmatpush1.xpose.msra.mxu0 0.0
      %638 = vmatprep.subr.mxu0 0.0
      %639 = vmatpush1.xpose.msra.mxu0 0.0
      %640 = vmatprep.subr.mxu0 0.0
      %641 = vmatpush1.xpose.msra.mxu0 0.0
      %642 = vmatprep.subr.mxu0 0.0
      %643 = vmatpush1.xpose.msra.mxu0 0.0
      %644 = vmatprep.subr.mxu0 0.0
      %645 = vmatpush1.xpose.msra.mxu0 0.0
      %646 = vmatprep.subr.mxu0 0.0
      %647 = vmatpush1.xpose.msra.mxu0 0.0
      %648 = vmatprep.mubr.f32.mxu0 0.0
      %649 = vmatmul.mubr.f32.gmra.mrb[0].mxu0 %v580
      %v650 = vpop.f32.mrb[0].mxu0
      %v651 = vadd.f32 0.0, %v650
      %v652 = vpop.f32.mrb[0].mxu0
      %653 = vdwg.mxu0
      %v654 = vmul.f32 %v651, 0.35355338
      %v655 = vsel %vm487, %v654, -3.4028235e+38
      %v656 = vsel %vm405, %v655, -inf
      %657 = vmax.xlane.f32.xlu0 %v656
      %v658 = vpop.xlane.xlu0 %657
      %v659 = vsub.f32 %v655, %v658
      %v660 = vmul.f32 %v659, 1.442695
      %v661 = vpow.pop %v660
      %v662 = vsel %vm405, %v661, 0.0
      %663 = vadd.xlane.f32.xlu0 %v662
      %v664 = vpop.xlane.xlu0 %663
      %v665 = vrcp.pop %v664
      %v666 = vmul.f32 %v661, %v665
      %667 = vrot.lane.b32.xlu0 %v398, 56
      %v668 = vpop.permute.xlu0 %667
      %v671 = vsel %vm405, %v666, 0
      %673 = vmatprep.subr.mxu0 0.0
      %674 = vmatpush1.msra.mxu0 %v668
      %675 = vmatprep.subr.mxu0 0.0
      %676 = vmatpush1.msra.mxu0 0.0
      %677 = vmatprep.subr.mxu0 0.0
      %678 = vmatpush1.msra.mxu0 0.0
      %679 = vmatprep.subr.mxu0 0.0
      %680 = vmatpush1.msra.mxu0 0.0
      %681 = vmatprep.subr.mxu0 0.0
      %682 = vmatpush1.msra.mxu0 0.0
      %683 = vmatprep.subr.mxu0 0.0
      %684 = vmatpush1.msra.mxu0 0.0
      %685 = vmatprep.subr.mxu0 0.0
      %686 = vmatpush1.msra.mxu0 0.0
      %687 = vmatprep.subr.mxu0 0.0
      %688 = vmatpush1.msra.mxu0 0.0
      %689 = vmatprep.subr.mxu0 0.0
      %690 = vmatpush1.msra.mxu0 0.0
      %691 = vmatprep.subr.mxu0 0.0
      %692 = vmatpush1.msra.mxu0 0.0
      %693 = vmatprep.subr.mxu0 0.0
      %694 = vmatpush1.msra.mxu0 0.0
      %695 = vmatprep.subr.mxu0 0.0
      %696 = vmatpush1.msra.mxu0 0.0
      %697 = vmatprep.subr.mxu0 0.0
      %698 = vmatpush1.msra.mxu0 0.0
      %699 = vmatprep.subr.mxu0 0.0
      %700 = vmatpush1.msra.mxu0 0.0
      %701 = vmatprep.subr.mxu0 0.0
      %702 = vmatpush1.msra.mxu0 0.0
      %703 = vmatprep.subr.mxu0 0.0
      %704 = vmatpush1.msra.mxu0 0.0
      %705 = vmatprep.subr.mxu0 0.0
      %706 = vmatpush1.msra.mxu0 0.0
      %707 = vmatprep.subr.mxu0 0.0
      %708 = vmatpush1.msra.mxu0 0.0
      %709 = vmatprep.subr.mxu0 0.0
      %710 = vmatpush1.msra.mxu0 0.0
      %711 = vmatprep.subr.mxu0 0.0
      %712 = vmatpush1.msra.mxu0 0.0
      %713 = vmatprep.subr.mxu0 0.0
      %714 = vmatpush1.msra.mxu0 0.0
      %715 = vmatprep.subr.mxu0 0.0
      %716 = vmatpush1.msra.mxu0 0.0
      %717 = vmatprep.subr.mxu0 0.0
      %718 = vmatpush1.msra.mxu0 0.0
      %719 = vmatprep.subr.mxu0 0.0
      %720 = vmatpush1.msra.mxu0 0.0
      %721 = vmatprep.subr.mxu0 0.0
      %722 = vmatpush1.msra.mxu0 0.0
      %723 = vmatprep.subr.mxu0 0.0
      %724 = vmatpush1.msra.mxu0 0.0
      %725 = vmatprep.subr.mxu0 0.0
      %726 = vmatpush1.msra.mxu0 0.0
      %727 = vmatprep.subr.mxu0 0.0
      %728 = vmatpush1.msra.mxu0 0.0
      %729 = vmatprep.subr.mxu0 0.0
      %730 = vmatpush1.msra.mxu0 0.0
      %731 = vmatprep.subr.mxu0 0.0
      %732 = vmatpush1.msra.mxu0 0.0
      %733 = vmatprep.subr.mxu0 0.0
      %734 = vmatpush1.msra.mxu0 0.0
      %735 = vmatprep.subr.mxu0 0.0
      %736 = vmatpush1.msra.mxu0 0.0
      %737 = vmatprep.mubr.f32.mxu0 0.0
      %738 = vmatmul.mubr.f32.gmra.mrb[0].mxu0 %v671
      %v739 = vpop.f32.mrb[0].mxu0
      %v740 = vadd.f32 0.0, %v739
      %v741 = vpop.f32.mrb[0].mxu0
      %742 = vdwg.mxu0
      %743 = vrot.lane.b32.xlu0 %v398, 112
      %v744 = vpop.permute.xlu0 %743
      %745 = vrot.lane.b32.xlu0 %v398, 80
      %v746 = vpop.permute.xlu0 %745
      %v747 = vsel %vm405, %v744, 0
      %v749 = vsel %vm405, %v746, 0
      %751 = vmatprep.subr.mxu0 0.0
      %752 = vmatpush1.xpose.msra.mxu0 %v749
      %753 = vmatprep.subr.mxu0 0.0
      %754 = vmatpush1.xpose.msra.mxu0 0.0
      %755 = vmatprep.subr.mxu0 0.0
      %756 = vmatpush1.xpose.msra.mxu0 0.0
      %757 = vmatprep.subr.mxu0 0.0
      %758 = vmatpush1.xpose.msra.mxu0 0.0
      %759 = vmatprep.subr.mxu0 0.0
      %760 = vmatpush1.xpose.msra.mxu0 0.0
      %761 = vmatprep.subr.mxu0 0.0
      %762 = vmatpush1.xpose.msra.mxu0 0.0
      %763 = vmatprep.subr.mxu0 0.0
      %764 = vmatpush1.xpose.msra.mxu0 0.0
      %765 = vmatprep.subr.mxu0 0.0
      %766 = vmatpush1.xpose.msra.mxu0 0.0
      %767 = vmatprep.subr.mxu0 0.0
      %768 = vmatpush1.xpose.msra.mxu0 0.0
      %769 = vmatprep.subr.mxu0 0.0
      %770 = vmatpush1.xpose.msra.mxu0 0.0
      %771 = vmatprep.subr.mxu0 0.0
      %772 = vmatpush1.xpose.msra.mxu0 0.0
      %773 = vmatprep.subr.mxu0 0.0
      %774 = vmatpush1.xpose.msra.mxu0 0.0
      %775 = vmatprep.subr.mxu0 0.0
      %776 = vmatpush1.xpose.msra.mxu0 0.0
      %777 = vmatprep.subr.mxu0 0.0
      %778 = vmatpush1.xpose.msra.mxu0 0.0
      %779 = vmatprep.subr.mxu0 0.0
      %780 = vmatpush1.xpose.msra.mxu0 0.0
      %781 = vmatprep.subr.mxu0 0.0
      %782 = vmatpush1.xpose.msra.mxu0 0.0
      %783 = vmatprep.subr.mxu0 0.0
      %784 = vmatpush1.xpose.msra.mxu0 0.0
      %785 = vmatprep.subr.mxu0 0.0
      %786 = vmatpush1.xpose.msra.mxu0 0.0
      %787 = vmatprep.subr.mxu0 0.0
      %788 = vmatpush1.xpose.msra.mxu0 0.0
      %789 = vmatprep.subr.mxu0 0.0
      %790 = vmatpush1.xpose.msra.mxu0 0.0
      %791 = vmatprep.subr.mxu0 0.0
      %792 = vmatpush1.xpose.msra.mxu0 0.0
      %793 = vmatprep.subr.mxu0 0.0
      %794 = vmatpush1.xpose.msra.mxu0 0.0
      %795 = vmatprep.subr.mxu0 0.0
      %796 = vmatpush1.xpose.msra.mxu0 0.0
      %797 = vmatprep.subr.mxu0 0.0
      %798 = vmatpush1.xpose.msra.mxu0 0.0
      %799 = vmatprep.subr.mxu0 0.0
      %800 = vmatpush1.xpose.msra.mxu0 0.0
      %801 = vmatprep.subr.mxu0 0.0
      %802 = vmatpush1.xpose.msra.mxu0 0.0
      %803 = vmatprep.subr.mxu0 0.0
      %804 = vmatpush1.xpose.msra.mxu0 0.0
      %805 = vmatprep.subr.mxu0 0.0
      %806 = vmatpush1.xpose.msra.mxu0 0.0
      %807 = vmatprep.subr.mxu0 0.0
      %808 = vmatpush1.xpose.msra.mxu0 0.0
      %809 = vmatprep.subr.mxu0 0.0
      %810 = vmatpush1.xpose.msra.mxu0 0.0
      %811 = vmatprep.subr.mxu0 0.0
      %812 = vmatpush1.xpose.msra.mxu0 0.0
      %813 = vmatprep.subr.mxu0 0.0
      %814 = vmatpush1.xpose.msra.mxu0 0.0
      %815 = vmatprep.mubr.f32.mxu0 0.0
      %816 = vmatmul.mubr.f32.gmra.mrb[0].mxu0 %v747
      %v817 = vpop.f32.mrb[0].mxu0
      %v818 = vadd.f32 0.0, %v817
      %v819 = vpop.f32.mrb[0].mxu0
      %820 = vdwg.mxu0
      %v821 = vmul.f32 %v818, 0.35355338
      %v822 = vsel %vm487, %v821, -3.4028235e+38
      %v823 = vsel %vm405, %v822, -inf
      %824 = vmax.xlane.f32.xlu0 %v823
      %v825 = vpop.xlane.xlu0 %824
      %v826 = vsub.f32 %v822, %v825
      %v827 = vmul.f32 %v826, 1.442695
      %v828 = vpow.pop %v827
      %v829 = vsel %vm405, %v828, 0.0
      %830 = vadd.xlane.f32.xlu0 %v829
      %v831 = vpop.xlane.xlu0 %830
      %v832 = vrcp.pop %v831
      %v833 = vmul.f32 %v828, %v832
      %834 = vrot.lane.b32.xlu0 %v398, 48
      %v835 = vpop.permute.xlu0 %834
      %v838 = vsel %vm405, %v833, 0
      %840 = vmatprep.subr.mxu0 0.0
      %841 = vmatpush1.msra.mxu0 %v835
      %842 = vmatprep.subr.mxu0 0.0
      %843 = vmatpush1.msra.mxu0 0.0
      %844 = vmatprep.subr.mxu0 0.0
      %845 = vmatpush1.msra.mxu0 0.0
      %846 = vmatprep.subr.mxu0 0.0
      %847 = vmatpush1.msra.mxu0 0.0
      %848 = vmatprep.subr.mxu0 0.0
      %849 = vmatpush1.msra.mxu0 0.0
      %850 = vmatprep.subr.mxu0 0.0
      %851 = vmatpush1.msra.mxu0 0.0
      %852 = vmatprep.subr.mxu0 0.0
      %853 = vmatpush1.msra.mxu0 0.0
      %854 = vmatprep.subr.mxu0 0.0
      %855 = vmatpush1.msra.mxu0 0.0
      %856 = vmatprep.subr.mxu0 0.0
      %857 = vmatpush1.msra.mxu0 0.0
      %858 = vmatprep.subr.mxu0 0.0
      %859 = vmatpush1.msra.mxu0 0.0
      %860 = vmatprep.subr.mxu0 0.0
      %861 = vmatpush1.msra.mxu0 0.0
      %862 = vmatprep.subr.mxu0 0.0
      %863 = vmatpush1.msra.mxu0 0.0
      %864 = vmatprep.subr.mxu0 0.0
      %865 = vmatpush1.msra.mxu0 0.0
      %866 = vmatprep.subr.mxu0 0.0
      %867 = vmatpush1.msra.mxu0 0.0
      %868 = vmatprep.subr.mxu0 0.0
      %869 = vmatpush1.msra.mxu0 0.0
      %870 = vmatprep.subr.mxu0 0.0
      %871 = vmatpush1.msra.mxu0 0.0
      %872 = vmatprep.subr.mxu0 0.0
      %873 = vmatpush1.msra.mxu0 0.0
      %874 = vmatprep.subr.mxu0 0.0
      %875 = vmatpush1.msra.mxu0 0.0
      %876 = vmatprep.subr.mxu0 0.0
      %877 = vmatpush1.msra.mxu0 0.0
      %878 = vmatprep.subr.mxu0 0.0
      %879 = vmatpush1.msra.mxu0 0.0
      %880 = vmatprep.subr.mxu0 0.0
      %881 = vmatpush1.msra.mxu0 0.0
      %882 = vmatprep.subr.mxu0 0.0
      %883 = vmatpush1.msra.mxu0 0.0
      %884 = vmatprep.subr.mxu0 0.0
      %885 = vmatpush1.msra.mxu0 0.0
      %886 = vmatprep.subr.mxu0 0.0
      %887 = vmatpush1.msra.mxu0 0.0
      %888 = vmatprep.subr.mxu0 0.0
      %889 = vmatpush1.msra.mxu0 0.0
      %890 = vmatprep.subr.mxu0 0.0
      %891 = vmatpush1.msra.mxu0 0.0
      %892 = vmatprep.subr.mxu0 0.0
      %893 = vmatpush1.msra.mxu0 0.0
      %894 = vmatprep.subr.mxu0 0.0
      %895 = vmatpush1.msra.mxu0 0.0
      %896 = vmatprep.subr.mxu0 0.0
      %897 = vmatpush1.msra.mxu0 0.0
      %898 = vmatprep.subr.mxu0 0.0
      %899 = vmatpush1.msra.mxu0 0.0
      %900 = vmatprep.subr.mxu0 0.0
      %901 = vmatpush1.msra.mxu0 0.0
      %902 = vmatprep.subr.mxu0 0.0
      %903 = vmatpush1.msra.mxu0 0.0
      %904 = vmatprep.mubr.f32.mxu0 0.0
      %905 = vmatmul.mubr.f32.gmra.mrb[0].mxu0 %v838
      %v906 = vpop.f32.mrb[0].mxu0
      %v907 = vadd.f32 0.0, %v906
      %v908 = vpop.f32.mrb[0].mxu0
      %909 = vdwg.mxu0
      %910 = vrot.lane.b32.xlu0 %v398, 104
      %v911 = vpop.permute.xlu0 %910
      %912 = vrot.lane.b32.xlu0 %v398, 72
      %v913 = vpop.permute.xlu0 %912
      %v914 = vsel %vm405, %v911, 0
      %v916 = vsel %vm405, %v913, 0
      %918 = vmatprep.subr.mxu0 0.0
      %919 = vmatpush1.xpose.msra.mxu0 %v916
      %920 = vmatprep.subr.mxu0 0.0
      %921 = vmatpush1.xpose.msra.mxu0 0.0
      %922 = vmatprep.subr.mxu0 0.0
      %923 = vmatpush1.xpose.msra.mxu0 0.0
      %924 = vmatprep.subr.mxu0 0.0
      %925 = vmatpush1.xpose.msra.mxu0 0.0
      %926 = vmatprep.subr.mxu0 0.0
      %927 = vmatpush1.xpose.msra.mxu0 0.0
      %928 = vmatprep.subr.mxu0 0.0
      %929 = vmatpush1.xpose.msra.mxu0 0.0
      %930 = vmatprep.subr.mxu0 0.0
      %931 = vmatpush1.xpose.msra.mxu0 0.0
      %932 = vmatprep.subr.mxu0 0.0
      %933 = vmatpush1.xpose.msra.mxu0 0.0
      %934 = vmatprep.subr.mxu0 0.0
      %935 = vmatpush1.xpose.msra.mxu0 0.0
      %936 = vmatprep.subr.mxu0 0.0
      %937 = vmatpush1.xpose.msra.mxu0 0.0
      %938 = vmatprep.subr.mxu0 0.0
      %939 = vmatpush1.xpose.msra.mxu0 0.0
      %940 = vmatprep.subr.mxu0 0.0
      %941 = vmatpush1.xpose.msra.mxu0 0.0
      %942 = vmatprep.subr.mxu0 0.0
      %943 = vmatpush1.xpose.msra.mxu0 0.0
      %944 = vmatprep.subr.mxu0 0.0
      %945 = vmatpush1.xpose.msra.mxu0 0.0
      %946 = vmatprep.subr.mxu0 0.0
      %947 = vmatpush1.xpose.msra.mxu0 0.0
      %948 = vmatprep.subr.mxu0 0.0
      %949 = vmatpush1.xpose.msra.mxu0 0.0
      %950 = vmatprep.subr.mxu0 0.0
      %951 = vmatpush1.xpose.msra.mxu0 0.0
      %952 = vmatprep.subr.mxu0 0.0
      %953 = vmatpush1.xpose.msra.mxu0 0.0
      %954 = vmatprep.subr.mxu0 0.0
      %955 = vmatpush1.xpose.msra.mxu0 0.0
      %956 = vmatprep.subr.mxu0 0.0
      %957 = vmatpush1.xpose.msra.mxu0 0.0
      %958 = vmatprep.subr.mxu0 0.0
      %959 = vmatpush1.xpose.msra.mxu0 0.0
      %960 = vmatprep.subr.mxu0 0.0
      %961 = vmatpush1.xpose.msra.mxu0 0.0
      %962 = vmatprep.subr.mxu0 0.0
      %963 = vmatpush1.xpose.msra.mxu0 0.0
      %964 = vmatprep.subr.mxu0 0.0
      %965 = vmatpush1.xpose.msra.mxu0 0.0
      %966 = vmatprep.subr.mxu0 0.0
      %967 = vmatpush1.xpose.msra.mxu0 0.0
      %968 = vmatprep.subr.mxu0 0.0
      %969 = vmatpush1.xpose.msra.mxu0 0.0
      %970 = vmatprep.subr.mxu0 0.0
      %971 = vmatpush1.xpose.msra.mxu0 0.0
      %972 = vmatprep.subr.mxu0 0.0
      %973 = vmatpush1.xpose.msra.mxu0 0.0
      %974 = vmatprep.subr.mxu0 0.0
      %975 = vmatpush1.xpose.msra.mxu0 0.0
      %976 = vmatprep.subr.mxu0 0.0
      %977 = vmatpush1.xpose.msra.mxu0 0.0
      %978 = vmatprep.subr.mxu0 0.0
      %979 = vmatpush1.xpose.msra.mxu0 0.0
      %980 = vmatprep.subr.mxu0 0.0
      %981 = vmatpush1.xpose.msra.mxu0 0.0
      %982 = vmatprep.mubr.f32.mxu0 0.0
      %983 = vmatmul.mubr.f32.gmra.mrb[0].mxu0 %v914
      %v984 = vpop.f32.mrb[0].mxu0
      %v985 = vadd.f32 0.0, %v984
      %v986 = vpop.f32.mrb[0].mxu0
      %987 = vdwg.mxu0
      %v988 = vmul.f32 %v985, 0.35355338
      %v989 = vsel %vm487, %v988, -3.4028235e+38
      %v990 = vsel %vm405, %v989, -inf
      %991 = vmax.xlane.f32.xlu0 %v990
      %v992 = vpop.xlane.xlu0 %991
      %v993 = vsub.f32 %v989, %v992
      %v994 = vmul.f32 %v993, 1.442695
      %v995 = vpow.pop %v994
      %v996 = vsel %vm405, %v995, 0.0
      %997 = vadd.xlane.f32.xlu0 %v996
      %v998 = vpop.xlane.xlu0 %997
      %v999 = vrcp.pop %v998
      %v1000 = vmul.f32 %v995, %v999
      %1001 = vrot.lane.b32.xlu0 %v398, 40
      %v1002 = vpop.permute.xlu0 %1001
      %v1005 = vsel %vm405, %v1000, 0
      %1007 = vmatprep.subr.mxu0 0.0
      %1008 = vmatpush1.msra.mxu0 %v1002
      %1009 = vmatprep.subr.mxu0 0.0
      %1010 = vmatpush1.msra.mxu0 0.0
      %1011 = vmatprep.subr.mxu0 0.0
      %1012 = vmatpush1.msra.mxu0 0.0
      %1013 = vmatprep.subr.mxu0 0.0
      %1014 = vmatpush1.msra.mxu0 0.0
      %1015 = vmatprep.subr.mxu0 0.0
      %1016 = vmatpush1.msra.mxu0 0.0
      %1017 = vmatprep.subr.mxu0 0.0
      %1018 = vmatpush1.msra.mxu0 0.0
      %1019 = vmatprep.subr.mxu0 0.0
      %1020 = vmatpush1.msra.mxu0 0.0
      %1021 = vmatprep.subr.mxu0 0.0
      %1022 = vmatpush1.msra.mxu0 0.0
      %1023 = vmatprep.subr.mxu0 0.0
      %1024 = vmatpush1.msra.mxu0 0.0
      %1025 = vmatprep.subr.mxu0 0.0
      %1026 = vmatpush1.msra.mxu0 0.0
      %1027 = vmatprep.subr.mxu0 0.0
      %1028 = vmatpush1.msra.mxu0 0.0
      %1029 = vmatprep.subr.mxu0 0.0
      %1030 = vmatpush1.msra.mxu0 0.0
      %1031 = vmatprep.subr.mxu0 0.0
      %1032 = vmatpush1.msra.mxu0 0.0
      %1033 = vmatprep.subr.mxu0 0.0
      %1034 = vmatpush1.msra.mxu0 0.0
      %1035 = vmatprep.subr.mxu0 0.0
      %1036 = vmatpush1.msra.mxu0 0.0
      %1037 = vmatprep.subr.mxu0 0.0
      %1038 = vmatpush1.msra.mxu0 0.0
      %1039 = vmatprep.subr.mxu0 0.0
      %1040 = vmatpush1.msra.mxu0 0.0
      %1041 = vmatprep.subr.mxu0 0.0
      %1042 = vmatpush1.msra.mxu0 0.0
      %1043 = vmatprep.subr.mxu0 0.0
      %1044 = vmatpush1.msra.mxu0 0.0
      %1045 = vmatprep.subr.mxu0 0.0
      %1046 = vmatpush1.msra.mxu0 0.0
      %1047 = vmatprep.subr.mxu0 0.0
      %1048 = vmatpush1.msra.mxu0 0.0
      %1049 = vmatprep.subr.mxu0 0.0
      %1050 = vmatpush1.msra.mxu0 0.0
      %1051 = vmatprep.subr.mxu0 0.0
      %1052 = vmatpush1.msra.mxu0 0.0
      %1053 = vmatprep.subr.mxu0 0.0
      %1054 = vmatpush1.msra.mxu0 0.0
      %1055 = vmatprep.subr.mxu0 0.0
      %1056 = vmatpush1.msra.mxu0 0.0
      %1057 = vmatprep.subr.mxu0 0.0
      %1058 = vmatpush1.msra.mxu0 0.0
      %1059 = vmatprep.subr.mxu0 0.0
      %1060 = vmatpush1.msra.mxu0 0.0
      %1061 = vmatprep.subr.mxu0 0.0
      %1062 = vmatpush1.msra.mxu0 0.0
      %1063 = vmatprep.subr.mxu0 0.0
      %1064 = vmatpush1.msra.mxu0 0.0
      %1065 = vmatprep.subr.mxu0 0.0
      %1066 = vmatpush1.msra.mxu0 0.0
      %1067 = vmatprep.subr.mxu0 0.0
      %1068 = vmatpush1.msra.mxu0 0.0
      %1069 = vmatprep.subr.mxu0 0.0
      %1070 = vmatpush1.msra.mxu0 0.0
      %1071 = vmatprep.mubr.f32.mxu0 0.0
      %1072 = vmatmul.mubr.f32.gmra.mrb[0].mxu0 %v1005
      %v1073 = vpop.f32.mrb[0].mxu0
      %v1074 = vadd.f32 0.0, %v1073
      %v1075 = vpop.f32.mrb[0].mxu0
      %1076 = vdwg.mxu0
      %1078 = vrot.lane.b32.xlu0 %v740, 8
      %v1079 = vpop.permute.xlu0 %1078
      %1082 = vrot.lane.b32.xlu0 %v907, 16
      %v1083 = vpop.permute.xlu0 %1082
      %1086 = vrot.lane.b32.xlu0 %v1074, 24
      %v1087 = vpop.permute.xlu0 %1086
      %v1089 = vsel %vm405, %v573, %v1079
      %vm1090 = vcmask 130048
      %v1091 = vsel %vm1090, %v1089, %v1083
      %vm1092 = vcmask 195584
      %v1093 = vsel %vm1092, %v1091, %v1087
      %v1094 = vld [vmem:[%s4] sm:$0xff]
      %v1095 = vld [vmem:[%s4 + $0x8] sm:$0xff]
      %v1096 = vld [vmem:[%s4 + $0x10] sm:$0xff]
      %v1097 = vld [vmem:[%s4 + $0x18] sm:$0xff]
      %v1098 = vld [vmem:[%s5] sm:$0x1]
      %v1100 = vlaneseq
      %v1101 = vshrl.u32 %v1100, 7
      %v1102 = vsub.s32 0, %v1101
      %v1103 = vrot.slane %v1098, %v1102
      %v1106 = vsel %vm327, %v1093, 0
      %1108 = vmatprep.subr.mxu0 0.0
      %1109 = vmatpush1.msra.mxu0 %v1094
      %1110 = vmatprep.subr.mxu0 0.0
      %1111 = vmatpush1.msra.mxu0 %v1095
      %1112 = vmatprep.subr.mxu0 0.0
      %1113 = vmatpush1.msra.mxu0 %v1096
      %1114 = vmatprep.subr.mxu0 0.0
      %1115 = vmatpush1.msra.mxu0 %v1097
      %1116 = vmatprep.subr.mxu0 0.0
      %1117 = vmatpush1.msra.mxu0 0.0
      %1118 = vmatprep.subr.mxu0 0.0
      %1119 = vmatpush1.msra.mxu0 0.0
      %1120 = vmatprep.subr.mxu0 0.0
      %1121 = vmatpush1.msra.mxu0 0.0
      %1122 = vmatprep.subr.mxu0 0.0
      %1123 = vmatpush1.msra.mxu0 0.0
      %1124 = vmatprep.subr.mxu0 0.0
      %1125 = vmatpush1.msra.mxu0 0.0
      %1126 = vmatprep.subr.mxu0 0.0
      %1127 = vmatpush1.msra.mxu0 0.0
      %1128 = vmatprep.subr.mxu0 0.0
      %1129 = vmatpush1.msra.mxu0 0.0
      %1130 = vmatprep.subr.mxu0 0.0
      %1131 = vmatpush1.msra.mxu0 0.0
      %1132 = vmatprep.subr.mxu0 0.0
      %1133 = vmatpush1.msra.mxu0 0.0
      %1134 = vmatprep.subr.mxu0 0.0
      %1135 = vmatpush1.msra.mxu0 0.0
      %1136 = vmatprep.subr.mxu0 0.0
      %1137 = vmatpush1.msra.mxu0 0.0
      %1138 = vmatprep.subr.mxu0 0.0
      %1139 = vmatpush1.msra.mxu0 0.0
      %1140 = vmatprep.subr.mxu0 0.0
      %1141 = vmatpush1.msra.mxu0 0.0
      %1142 = vmatprep.subr.mxu0 0.0
      %1143 = vmatpush1.msra.mxu0 0.0
      %1144 = vmatprep.subr.mxu0 0.0
      %1145 = vmatpush1.msra.mxu0 0.0
      %1146 = vmatprep.subr.mxu0 0.0
      %1147 = vmatpush1.msra.mxu0 0.0
      %1148 = vmatprep.subr.mxu0 0.0
      %1149 = vmatpush1.msra.mxu0 0.0
      %1150 = vmatprep.subr.mxu0 0.0
      %1151 = vmatpush1.msra.mxu0 0.0
      %1152 = vmatprep.subr.mxu0 0.0
      %1153 = vmatpush1.msra.mxu0 0.0
      %1154 = vmatprep.subr.mxu0 0.0
      %1155 = vmatpush1.msra.mxu0 0.0
      %1156 = vmatprep.subr.mxu0 0.0
      %1157 = vmatpush1.msra.mxu0 0.0
      %1158 = vmatprep.subr.mxu0 0.0
      %1159 = vmatpush1.msra.mxu0 0.0
      %1160 = vmatprep.subr.mxu0 0.0
      %1161 = vmatpush1.msra.mxu0 0.0
      %1162 = vmatprep.subr.mxu0 0.0
      %1163 = vmatpush1.msra.mxu0 0.0
      %1164 = vmatprep.subr.mxu0 0.0
      %1165 = vmatpush1.msra.mxu0 0.0
      %1166 = vmatprep.subr.mxu0 0.0
      %1167 = vmatpush1.msra.mxu0 0.0
      %1168 = vmatprep.subr.mxu0 0.0
      %1169 = vmatpush1.msra.mxu0 0.0
      %1170 = vmatprep.subr.mxu0 0.0
      %1171 = vmatpush1.msra.mxu0 0.0
      %1172 = vmatprep.mubr.f32.mxu0 0.0
      %1173 = vmatmul.mubr.f32.gmra.mrb[0].mxu0 %v1106
      %v1174 = vpop.f32.mrb[0].mxu0
      %v1175 = vadd.f32 %v1103, %v1174
      %v1176 = vpop.f32.mrb[0].mxu0
      %1177 = vdwg.mxu0
      %v1178 = vadd.f32 %v315, %v1175
      %v1179 = vsel %vm327, %v1178, 0.0
      %1180 = vadd.xlane.f32.xlu0 %v1179
      %v1181 = vpop.xlane.xlu0 %1180
      %v1182 = vrcp.pop 32.0
      %v1183 = vmul.f32 %v1181, %v1182
      %v1184 = vsub.f32 %v1178, %v1183
      %v1185 = vmul.f32 %v1184, %v1184
      %v1186 = vsel %vm327, %v1185, 0.0
      %1187 = vadd.xlane.f32.xlu0 %v1186
      %v1188 = vpop.xlane.xlu0 %1187
      %v1189 = vmul.f32 %v1188, %v1182
      %v1190 = vadd.f32 %v1189, 1e-05
      %v1191 = vrsqrt.pop %v1190
      %v1192 = vmul.f32 %v1184, %v1191
      %v1193 = vld [vmem:[%s6] sm:$0x1]
      %v1195 = vlaneseq
      %v1196 = vshrl.u32 %v1195, 7
      %v1197 = vsub.s32 0, %v1196
      %v1198 = vrot.slane %v1193, %v1197
      %v1200 = vmul.f32 %v1192, %v1198
      %v1201 = vld [vmem:[%s7] sm:$0x1]
      %v1203 = vlaneseq
      %v1204 = vshrl.u32 %v1203, 7
      %v1205 = vsub.s32 0, %v1204
      %v1206 = vrot.slane %v1201, %v1205
      %v1208 = vadd.f32 %v1200, %v1206
      %1209 = vst.msk [vmem:[%s314] sm:$0xff] %vm327, %v1208
      %p1210 = scmp.lt.s32.totalorder %s19, 1
      %s1211 = scalar_select %p1210, %s19, 1
      %s1212 = smul.addr %s1211, 8
      %s1213 = scalar_lea.vmem %s8, %s1212
      // Predicated region
      $region53: #{bert_forward_pallas.7} parent=51 // pred_check
        %p1214 = pneg %p215
      $region54: #{bert_forward_pallas.7} parent=51 // pred_check_branch
        %1216 = sbr.rel (%p1214) target = $region56
      $region55: #{bert_forward_pallas.7} parent=51 // pred_region
        _
      $region56: #{bert_forward_pallas.7} parent=51 // pred_fallthru
        _
    $region52: #{bert_forward_pallas.7} parent=5 // pred_fallthru
      _
    %p1217 = scmp.le.s32.totalorder 2, %s14
    // Predicated region
    $region57: #{bert_forward_pallas.7} parent=5 // pred_check
      %p1218 = pneg %p1217
    $region58: #{bert_forward_pallas.7} parent=5 // pred_check_branch
      %1220 = sbr.rel (%p1218) target = $region60
    $region59: #{bert_forward_pallas.7} parent=5 // pred_region
      %s1221 = ssub.s32 %s14, 2
      // Predicated region
      $region61: #{bert_forward_pallas.7} parent=59 // pred_check
        %p1222 = pneg %p221
      $region62: #{bert_forward_pallas.7} parent=59 // pred_check_branch
        %1224 = sbr.rel (%p1222) target = $region64
      $region63: #{bert_forward_pallas.7} parent=59 // pred_region
        %p1225 = scmp.lt.s32.totalorder %s20, 1
        %s1226 = scalar_select %p1225, %s20, 1
        %s1227 = smul.addr %s1226, 8
        %s1228 = scalar_lea.vmem %s8, %s1227
      $region64: #{bert_forward_pallas.7} parent=59 // pred_fallthru
        _
    $region60: #{bert_forward_pallas.7} parent=5 // pred_fallthru
      _
  $region6: #{bert_forward_pallas.7} parent=0 // loop_footer
    %s18 = sadd.s32 1, %s14
  $region7: #{bert_forward_pallas.7} parent=0 // loop_footer_branch
    %13 = sbr.rel target = $region3
  $region8: #{bert_forward_pallas.7} parent=0 // loop_exit
    _

</llo_original>
